<compile_context>
chip_gen: v5e
topology: v5e:2x2
jax: 0.10.0
libtpu: 0.0.40
codegen_flags: <defaults>
</compile_context>

<pallas_src>
import math

import jax
import jax.numpy as jnp
from jax.experimental import pallas as pl
from jax.experimental.pallas import tpu as pltpu

# ----- synthetic "args" (small shapes) ---------------------------------------
B          = 2      # batch
NVARS      = 4      # args.nvars
SAMPLE_LEN = 64     # args.sample_len
PATCH_LEN  = 8      # args.patch_len  (patch=True, patch_type='before_encode')
STRIDE     = 8      # args.shapelet_stride == patch_stride (== PATCH_LEN -> reshape unfold)
PATCH_DIM  = 32     # patch_dim (W_P output)
D_MODEL    = 32     # feature-extractor channels
NBINS      = 4      # args.nbins (num classes)
KSIZE      = 3      # conv kernel of the synthetic FCN feature extractor
MEAN_NORM  = True   # args.mean_norm

PATCH_NUM = (SAMPLE_LEN - PATCH_LEN) // STRIDE + 1   # = final_len for W_pos
DIN       = NVARS * PATCH_LEN                        # W_P input features (32)
PAD_T     = KSIZE // 2                               # conv zero-padding along time
LANE      = 128
D_PAD     = LANE                                     # d_model padded to full lanes
N_PAD     = LANE                                     # head output padded to full lanes
ATT_COL   = 0                                        # attention logit lives in lane 0

# Whole bags per grid block (pooling never straddles a block boundary).
# 64 bags * 8 patches = 512 MXU rows / block; ~0.5 MiB VMEM incl. resident weights.
BAGS_PER_BLOCK = 64


def millet_kernel(xp_ref, wf_ref, pbias_ref, wh_ref, bh_ref, out_ref):
    f32 = jnp.float32
    Bb = BAGS_PER_BLOCK

    # ---- in-kernel im2col for the k=3 / pad=1 conv --------------------------
    # Activations arrive bf16 (1x HBM traffic; the old 3x host-side duplication is
    # gone).  Shift glue runs in f32 along the leading (untiled) patch axis; each
    # tap is cast back to bf16 right at the MXU boundary.
    xf = xp_ref[...].astype(f32)                                   # (P, Bb, DIN)
    zslab = jnp.zeros((PAD_T, Bb, DIN), f32)
    xpad = jnp.concatenate([zslab, xf, zslab], axis=0)             # (P+2, Bb, DIN)

    # fused [W_P patch-embed + pos-enc + Conv1d(k=3) + ReLU]: KSIZE MXU taps (K=DIN)
    h = None
    for j in range(KSIZE):                                         # static unroll
        tap = xpad[j:j + PATCH_NUM].reshape(PATCH_NUM * Bb, DIN)
        hj = jnp.dot(tap.astype(jnp.bfloat16), wf_ref[j],
                     preferred_element_type=f32)                   # (P*Bb, D_PAD)
        h = hj if h is None else h + hj
    h = h.reshape(PATCH_NUM, Bb, D_PAD) + pbias_ref[...][:, None, :]
    h = jnp.maximum(h, 0.0)                                        # ReLU in f32 (v5e-safe)
    hb = h.reshape(PATCH_NUM * Bb, D_PAD).astype(jnp.bfloat16)     # hoisted bf16 cast

    # ---- conjunctive MIL pooling: fused head matmul + softmax over patches ---
    # col 0 = attention logit, cols 1..NBINS = per-timestep class logits.
    # Head bias deferred to the bag level (softmax shift-invariance, sum(w)=1).
    logits = jnp.dot(hb, wh_ref[...], preferred_element_type=f32)  # (P*Bb, N_PAD)
    logits = logits.reshape(PATCH_NUM, Bb, N_PAD)

    # Softmax over the patch axis (axis 0, untiled -> cheap cross-tile VPU ops,
    # no lane-width-1 masked reduce chain); only column ATT_COL of `w` is used.
    m = jnp.max(logits, axis=0, keepdims=True)                     # (1, Bb, N_PAD)
    e = jnp.exp(logits - m)
    w = e * pl.reciprocal(jnp.sum(e, axis=0, keepdims=True), approx=True)
    w_att = w[:, :, ATT_COL:ATT_COL + 1]                           # (P, Bb, 1)
    bag = jnp.sum(w_att * logits, axis=0)                          # (Bb, N_PAD)
    out_ref[...] = (bag + bh_ref[...]).astype(out_ref.dtype)       # deferred head bias


def fuse_params(params):
    """Fold W_P, W_pos, conv and the pooling heads into lane-dense fused operands."""
    W_P, b_P, W_pos, Wc, bc, W_cls, b_cls, w_attn, b_attn = params

    # per-tap fused conv weights: Wf[j] = W_P @ Wc[j]  (DIN, D_MODEL) -> (DIN, D_PAD)
    Wf = jnp.stack([W_P @ Wc[j] for j in range(KSIZE)], axis=0)
    Wf = jnp.pad(Wf, ((0, 0), (0, 0), (0, D_PAD - D_MODEL))).astype(jnp.bfloat16)

    # per-position bias: conv of (b_P + W_pos) with zero boundaries + conv bias
    pe = W_pos + b_P                                                             # (P, PATCH_DIM)
    pe_pad = jnp.pad(pe, ((PAD_T, PAD_T), (0, 0)))
    pbias = sum(pe_pad[j:j + PATCH_NUM] @ Wc[j] for j in range(KSIZE)) + bc      # (P, D_MODEL)
    pbias = jnp.pad(pbias, ((0, 0), (0, D_PAD - D_MODEL))).astype(jnp.float32)

    # fused pooling heads: attention at col 0, classifier at cols 1..NBINS
    Wh = jnp.concatenate([w_attn, W_cls], axis=1)                                # (D_MODEL, NBINS+1)
    Wh = jnp.pad(Wh, ((0, D_PAD - D_MODEL), (0, N_PAD - (NBINS + 1)))).astype(jnp.bfloat16)
    bh = jnp.concatenate([b_attn, b_cls], axis=1)                                # (1, NBINS+1)
    bh = jnp.pad(bh, ((0, 0), (0, N_PAD - (NBINS + 1)))).astype(jnp.float32)
    return Wf, pbias, Wh, bh


def millet_forward(bags, fused):
    """bags: (B, NVARS, SAMPLE_LEN) float32 -> bag logits (B, NBINS)."""
    Bin = bags.shape[0]
    # unfold(dim=-1, size=PATCH_LEN, step=STRIDE) with STRIDE == PATCH_LEN is a free
    # reshape (no gather); mean-norm + transpose + bf16 cast fuse into one XLA pass.
    x = bags.reshape(Bin, NVARS, PATCH_NUM, PATCH_LEN)
    if MEAN_NORM:
        x = x - x.mean(axis=2).mean(axis=-1)[:, :, None, None]
    # (P, B, DIN): patch axis leading so the in-kernel conv shift / pooling reductions
    # run along the untiled axis.
    xp = jnp.transpose(x, (2, 0, 1, 3)).reshape(PATCH_NUM, Bin, DIN).astype(jnp.bfloat16)

    # pad the batch to whole bag-blocks; zero bags yield finite garbage rows that are
    # sliced off below.
    n_blocks = -(-Bin // BAGS_PER_BLOCK)
    B_pad = n_blocks * BAGS_PER_BLOCK
    if B_pad != Bin:
        xp = jnp.pad(xp, ((0, 0), (0, B_pad - Bin), (0, 0)))

    Wf, pbias, Wh, bh = fused
    out = pl.pallas_call(
        millet_kernel,
        out_shape=jax.ShapeDtypeStruct((B_pad, N_PAD), jnp.float32),
        grid=(n_blocks,),
        in_specs=[
            # activations: one whole-bag block per grid step
            pl.BlockSpec((PATCH_NUM, BAGS_PER_BLOCK, DIN), lambda i: (0, i, 0)),
            # weights: constant block index -> VMEM-resident across the whole grid
            pl.BlockSpec((KSIZE, DIN, D_PAD), lambda i: (0, 0, 0)),
            pl.BlockSpec((PATCH_NUM, D_PAD), lambda i: (0, 0)),
            pl.BlockSpec((D_PAD, N_PAD), lambda i: (0, 0)),
            pl.BlockSpec((1, N_PAD), lambda i: (0, 0)),
        ],
        out_specs=pl.BlockSpec((BAGS_PER_BLOCK, N_PAD), lambda i: (i, 0)),
        compiler_params=pltpu.CompilerParams(
            dimension_semantics=("parallel",)),   # bag blocks independent -> v7x megacore
    )(xp, Wf, pbias, Wh, bh)
    return out[:Bin, 1:NBINS + 1]   # drop attention col 0 and the zero lane padding


def build_params(key):
    ks = jax.random.split(key, 9)

    def lin(k, shape, fan_in):
        bound = 1.0 / math.sqrt(fan_in)
        return jax.random.uniform(k, shape, jnp.float32, -bound, bound)

    W_P    = lin(ks[0], (DIN, PATCH_DIM), DIN)          # Linear weight (transposed)
    b_P    = lin(ks[1], (1, PATCH_DIM), DIN)
    # pe='zeros', learn_pe=True: learnable positional embedding; synthetic small init
    W_pos  = 0.02 * jax.random.normal(ks[2], (PATCH_NUM, PATCH_DIM), jnp.float32)
    # feature_extractor Conv1d weights stored as (k, C_in, C_out)
    Wc     = lin(ks[3], (KSIZE, PATCH_DIM, D_MODEL), PATCH_DIM * KSIZE)
    bc     = lin(ks[4], (1, D_MODEL), PATCH_DIM * KSIZE)
    # pool: conjunctive MIL pooling heads (1x1 convs == per-timestep linears)
    W_cls  = lin(ks[5], (D_MODEL, NBINS), D_MODEL)
    b_cls  = lin(ks[6], (1, NBINS), D_MODEL)
    w_attn = lin(ks[7], (D_MODEL, 1), D_MODEL)
    b_attn = lin(ks[8], (1, 1), D_MODEL)
    return (W_P, b_P, W_pos, Wc, bc, W_cls, b_cls, w_attn, b_attn)


def millet_reference(bags, params):
    """Pure-JAX f32 reference following the original (unfused) formulation."""
    W_P, b_P, W_pos, Wc, bc, W_cls, b_cls, w_attn, b_attn = params
    x = bags.reshape(B, NVARS, PATCH_NUM, PATCH_LEN)
    if MEAN_NORM:
        x = x - x.mean(axis=2).mean(axis=-1)[:, :, None, None]
    xp = jnp.transpose(x, (0, 2, 1, 3)).reshape(B, PATCH_NUM, DIN)
    emb = xp @ W_P + b_P + W_pos[None]
    emb_p = jnp.pad(emb, ((0, 0), (PAD_T, PAD_T), (0, 0)))
    h = sum(emb_p[:, j:j + PATCH_NUM] @ Wc[j] for j in range(KSIZE)) + bc
    h = jnp.maximum(h, 0.0)
    inst = h @ W_cls + b_cls
    att = (h @ w_attn + b_attn)[..., 0]
    att = att - att.max(axis=1, keepdims=True)
    e = jnp.exp(att)
    w = e / e.sum(axis=1, keepdims=True)
    return jnp.sum(w[:, :, None] * inst, axis=1)


if __name__ == "__main__":
    key = jax.random.PRNGKey(0)
    k_bags, k_params = jax.random.split(key)
    bags = jax.random.normal(k_bags, (B, NVARS, SAMPLE_LEN), jnp.float32)
    params = build_params(k_params)
    fused = fuse_params(params)

    out = millet_forward(bags, fused)
    out = jax.block_until_ready(out)
    assert out.shape == (B, NBINS), out.shape
    assert bool(jnp.all(jnp.isfinite(out)))

    ref = millet_reference(bags, params)
    assert bool(jnp.allclose(out, ref, atol=5e-2, rtol=5e-2)), (out, ref)
    print("KERNEL_OK")
</pallas_src>

<mosaic_0001>
module attributes {stable_mosaic.version = 11 : i64} {
  func.func @millet_kernel(%arg0: i32, %arg1: memref<8x64x32xbf16, #tpu.memory_space<vmem>>, %arg2: memref<3x32x128xbf16, #tpu.memory_space<vmem>>, %arg3: memref<8x128xf32, #tpu.memory_space<vmem>>, %arg4: memref<128x128xbf16, #tpu.memory_space<vmem>>, %arg5: memref<1x128xf32, #tpu.memory_space<vmem>>, %arg6: memref<64x128xf32, #tpu.memory_space<vmem>>) attributes {dimension_semantics = [#tpu.dimension_semantics<parallel>], iteration_bounds = array<i64: 1>, scalar_prefetch = 0 : i64, scratch_operands = 0 : i64, tpu.core_type = #tpu.core_type<tc>, window_params = [{transform_indices = @transform_0, window_bounds = array<i64: 8, 64, 32>}, {pipeline_mode = #tpu.pipeline_mode<synchronous>, transform_indices = @transform_1, window_bounds = array<i64: 3, 32, 128>}, {pipeline_mode = #tpu.pipeline_mode<synchronous>, transform_indices = @transform_2, window_bounds = array<i64: 8, 128>}, {pipeline_mode = #tpu.pipeline_mode<synchronous>, transform_indices = @transform_3, window_bounds = array<i64: 128, 128>}, {pipeline_mode = #tpu.pipeline_mode<synchronous>, transform_indices = @transform_4, window_bounds = array<i64: 1, 128>}, {transform_indices = @transform_5, window_bounds = array<i64: 64, 128>}]} {
    %c0 = arith.constant 0 : index
    %c0_0 = arith.constant 0 : index
    %c0_1 = arith.constant 0 : index
    %0 = vector.load %arg1[%c0, %c0_0, %c0_1] : memref<8x64x32xbf16, #tpu.memory_space<vmem>>, vector<8x64x32xbf16>
    %1 = arith.extf %0 : vector<8x64x32xbf16> to vector<8x64x32xf32>
    %cst = arith.constant 0.000000e+00 : f32
    %2 = vector.broadcast %cst : f32 to vector<1x64x32xf32>
    %3 = tpu.concatenate %2, %1, %2 in 0 : vector<1x64x32xf32>, vector<8x64x32xf32>, vector<1x64x32xf32> -> vector<10x64x32xf32>
    %4 = vector.extract_strided_slice %3 {offsets = [0, 0, 0], sizes = [8, 64, 32], strides = [1, 1, 1]} : vector<10x64x32xf32> to vector<8x64x32xf32>
    %5 = vector.shape_cast %4 : vector<8x64x32xf32> to vector<512x32xf32>
    %6 = arith.truncf %5 : vector<512x32xf32> to vector<512x32xbf16>
    %c0_2 = arith.constant 0 : index
    %c0_3 = arith.constant 0 : index
    %c0_4 = arith.constant 0 : index
    %7 = vector.load %arg2[%c0_2, %c0_3, %c0_4] : memref<3x32x128xbf16, #tpu.memory_space<vmem>>, vector<1x32x128xbf16>
    %8 = vector.shape_cast %7 : vector<1x32x128xbf16> to vector<32x128xbf16>
    %cst_5 = arith.constant dense<0.000000e+00> : vector<512x128xf32>
    %9 = tpu.matmul %6, %8, %cst_5 {dimension_numbers = #tpu.dot_dimension_numbers<[1], [0], [0], [1], [0, 0, 1, 1], [], []>} : vector<512x32xbf16>, vector<32x128xbf16>, vector<512x128xf32> -> vector<512x128xf32>
    %10 = vector.extract_strided_slice %3 {offsets = [1, 0, 0], sizes = [8, 64, 32], strides = [1, 1, 1]} : vector<10x64x32xf32> to vector<8x64x32xf32>
    %11 = vector.shape_cast %10 : vector<8x64x32xf32> to vector<512x32xf32>
    %12 = arith.truncf %11 : vector<512x32xf32> to vector<512x32xbf16>
    %c1 = arith.constant 1 : index
    %c0_6 = arith.constant 0 : index
    %c0_7 = arith.constant 0 : index
    %13 = vector.load %arg2[%c1, %c0_6, %c0_7] : memref<3x32x128xbf16, #tpu.memory_space<vmem>>, vector<1x32x128xbf16>
    %14 = vector.shape_cast %13 : vector<1x32x128xbf16> to vector<32x128xbf16>
    %cst_8 = arith.constant dense<0.000000e+00> : vector<512x128xf32>
    %15 = tpu.matmul %12, %14, %cst_8 {dimension_numbers = #tpu.dot_dimension_numbers<[1], [0], [0], [1], [0, 0, 1, 1], [], []>} : vector<512x32xbf16>, vector<32x128xbf16>, vector<512x128xf32> -> vector<512x128xf32>
    %16 = arith.addf %9, %15 : vector<512x128xf32>
    %17 = vector.extract_strided_slice %3 {offsets = [2, 0, 0], sizes = [8, 64, 32], strides = [1, 1, 1]} : vector<10x64x32xf32> to vector<8x64x32xf32>
    %18 = vector.shape_cast %17 : vector<8x64x32xf32> to vector<512x32xf32>
    %19 = arith.truncf %18 : vector<512x32xf32> to vector<512x32xbf16>
    %c2 = arith.constant 2 : index
    %c0_9 = arith.constant 0 : index
    %c0_10 = arith.constant 0 : index
    %20 = vector.load %arg2[%c2, %c0_9, %c0_10] : memref<3x32x128xbf16, #tpu.memory_space<vmem>>, vector<1x32x128xbf16>
    %21 = vector.shape_cast %20 : vector<1x32x128xbf16> to vector<32x128xbf16>
    %cst_11 = arith.constant dense<0.000000e+00> : vector<512x128xf32>
    %22 = tpu.matmul %19, %21, %cst_11 {dimension_numbers = #tpu.dot_dimension_numbers<[1], [0], [0], [1], [0, 0, 1, 1], [], []>} : vector<512x32xbf16>, vector<32x128xbf16>, vector<512x128xf32> -> vector<512x128xf32>
    %23 = arith.addf %16, %22 : vector<512x128xf32>
    %24 = vector.shape_cast %23 : vector<512x128xf32> to vector<8x64x128xf32>
    %c0_12 = arith.constant 0 : index
    %c0_13 = arith.constant 0 : index
    %25 = vector.load %arg3[%c0_12, %c0_13] : memref<8x128xf32, #tpu.memory_space<vmem>>, vector<8x128xf32>
    %26 = vector.shape_cast %25 : vector<8x128xf32> to vector<8x1x128xf32>
    %27 = vector.broadcast %26 : vector<8x1x128xf32> to vector<8x64x128xf32>
    %28 = arith.addf %24, %27 : vector<8x64x128xf32>
    %cst_14 = arith.constant 0.000000e+00 : f32
    %29 = vector.broadcast %cst_14 : f32 to vector<8x64x128xf32>
    %30 = arith.maximumf %28, %29 : vector<8x64x128xf32>
    %31 = vector.shape_cast %30 : vector<8x64x128xf32> to vector<512x128xf32>
    %32 = arith.truncf %31 : vector<512x128xf32> to vector<512x128xbf16>
    %c0_15 = arith.constant 0 : index
    %c0_16 = arith.constant 0 : index
    %33 = vector.load %arg4[%c0_15, %c0_16] : memref<128x128xbf16, #tpu.memory_space<vmem>>, vector<128x128xbf16>
    %cst_17 = arith.constant dense<0.000000e+00> : vector<512x128xf32>
    %34 = tpu.matmul %32, %33, %cst_17 {dimension_numbers = #tpu.dot_dimension_numbers<[1], [0], [0], [1], [0, 0, 1, 1], [], []>} : vector<512x128xbf16>, vector<128x128xbf16>, vector<512x128xf32> -> vector<512x128xf32>
    %35 = vector.shape_cast %34 : vector<512x128xf32> to vector<8x64x128xf32>
    %cst_18 = arith.constant dense<0xFF800000> : vector<64x128xf32>
    %36 = vector.multi_reduction <maximumf>, %35, %cst_18 [0] : vector<8x64x128xf32> to vector<64x128xf32>
    %37 = vector.shape_cast %36 : vector<64x128xf32> to vector<1x64x128xf32>
    %38 = vector.broadcast %37 : vector<1x64x128xf32> to vector<8x64x128xf32>
    %39 = arith.subf %35, %38 : vector<8x64x128xf32>
    %40 = math.exp %39 : vector<8x64x128xf32>
    %cst_19 = arith.constant dense<0.000000e+00> : vector<64x128xf32>
    %41 = vector.multi_reduction <add>, %40, %cst_19 [0] : vector<8x64x128xf32> to vector<64x128xf32>
    %42 = vector.shape_cast %41 : vector<64x128xf32> to vector<1x64x128xf32>
    %43 = tpu.reciprocal %42 {approx = true} : vector<1x64x128xf32> -> vector<1x64x128xf32>
    %44 = vector.broadcast %43 : vector<1x64x128xf32> to vector<8x64x128xf32>
    %45 = arith.mulf %40, %44 : vector<8x64x128xf32>
    %46 = vector.extract_strided_slice %45 {offsets = [0, 0, 0], sizes = [8, 64, 1], strides = [1, 1, 1]} : vector<8x64x128xf32> to vector<8x64x1xf32>
    %47 = vector.broadcast %46 : vector<8x64x1xf32> to vector<8x64x128xf32>
    %48 = arith.mulf %47, %35 : vector<8x64x128xf32>
    %cst_20 = arith.constant dense<0.000000e+00> : vector<64x128xf32>
    %49 = vector.multi_reduction <add>, %48, %cst_20 [0] : vector<8x64x128xf32> to vector<64x128xf32>
    %c0_21 = arith.constant 0 : index
    %c0_22 = arith.constant 0 : index
    %50 = vector.load %arg5[%c0_21, %c0_22] : memref<1x128xf32, #tpu.memory_space<vmem>>, vector<1x128xf32>
    %51 = vector.broadcast %50 : vector<1x128xf32> to vector<64x128xf32>
    %52 = arith.addf %49, %51 : vector<64x128xf32>
    %c0_23 = arith.constant 0 : index
    %c0_24 = arith.constant 0 : index
    %53 = vector.load %arg6[%c0_23, %c0_24] : memref<64x128xf32, #tpu.memory_space<vmem>>, vector<64x128xf32>
    tpu.vector_store %arg6[%c0_23, %c0_24], %52 {strides = array<i32>} : memref<64x128xf32, #tpu.memory_space<vmem>>, vector<64x128xf32>,
    return
  }
  func.func @transform_0(%arg0: i32) -> (i32, i32, i32) {
    %c0_i32 = arith.constant 0 : i32
    %c0_i32_0 = arith.constant 0 : i32
    %c0_i32_1 = arith.constant 0 : i32
    return %c0_i32, %arg0, %c0_i32_0 : i32, i32, i32
  }
  func.func @transform_1(%arg0: i32) -> (i32, i32, i32) {
    %c0_i32 = arith.constant 0 : i32
    %c0_i32_0 = arith.constant 0 : i32
    %c0_i32_1 = arith.constant 0 : i32
    %c0_i32_2 = arith.constant 0 : i32
    return %c0_i32, %c0_i32_0, %c0_i32_1 : i32, i32, i32
  }
  func.func @transform_2(%arg0: i32) -> (i32, i32) {
    %c0_i32 = arith.constant 0 : i32
    %c0_i32_0 = arith.constant 0 : i32
    %c0_i32_1 = arith.constant 0 : i32
    return %c0_i32, %c0_i32_0 : i32, i32
  }
  func.func @transform_3(%arg0: i32) -> (i32, i32) {
    %c0_i32 = arith.constant 0 : i32
    %c0_i32_0 = arith.constant 0 : i32
    %c0_i32_1 = arith.constant 0 : i32
    return %c0_i32, %c0_i32_0 : i32, i32
  }
  func.func @transform_4(%arg0: i32) -> (i32, i32) {
    %c0_i32 = arith.constant 0 : i32
    %c0_i32_0 = arith.constant 0 : i32
    %c0_i32_1 = arith.constant 0 : i32
    return %c0_i32, %c0_i32_0 : i32, i32
  }
  func.func @transform_5(%arg0: i32) -> (i32, i32) {
    %c0_i32 = arith.constant 0 : i32
    %c0_i32_0 = arith.constant 0 : i32
    return %arg0, %c0_i32 : i32, i32
  }
}

</mosaic_0001>

<llo_original>
// kernel: tpu_custom_call.1
$region0: #{tpu_custom_call.1}
  #allocation0 [shape = 'u32[]', space=smem, size = 0x4, offset = 0x4, fixed_abs, tag = 'smem constant byte address 0x4 - core index']
  #allocation1 [shape = 'u32[72,128]{1,0:T(1,128)}', space=vmem, size = 0x9000, scoped, tag = 'internal scratch']
  %s0 = inlined_call_operand.vmem [shape: bf16[8,64,32], index: 0, kind: input, shape index: {}]
  %s1 = inlined_call_operand.vmem [shape: bf16[3,32,128], index: 1, kind: input, shape index: {}]
  %s2 = inlined_call_operand.vmem [shape: f32[8,128], index: 2, kind: input, shape index: {}]
  %s3 = inlined_call_operand.vmem [shape: bf16[128,128], index: 3, kind: input, shape index: {}]
  %s4 = inlined_call_operand.vmem [shape: f32[1,128], index: 4, kind: input, shape index: {}]
  %s5 = inlined_call_operand.hbm [shape: f32[64,128], index: 5, kind: output, shape index: {}]
  %s6 = sld [smem:[#allocation0]]
  $region30: #{tpu_custom_call.1} parent=0
    _
  %s8 = ssub.s32 1, %s6
  %s9 = scalar_select 0, %s8, %s6
  $region1: #{tpu_custom_call.1} parent=0
    #allocation2 [shape = 'u8[32768]{0}', space=vmem, size = 0x8000, scoped, tag = 'output window, operand 0, single buffered']
    #allocation3 [shape = 's32[1]{0}', space=sflag, size = 0x4, scoped, tag = 'scoped memory for tpu_custom_call.1']
    %10 = vsyncpa [#allocation3], 0
    // Predicated region
    $region2: #{tpu_custom_call.1} parent=1 // pred_check
      _
    $region3: #{tpu_custom_call.1} parent=1 // pred_check_branch
      %12 = sbr.rel (0) target = $region5
    $region4: #{tpu_custom_call.1} parent=1 // pred_region
      _
    $region5: #{tpu_custom_call.1} parent=1 // pred_fallthru
      _
    // Predicated region
    $region6: #{tpu_custom_call.1} parent=1 // pred_check
      _
    $region7: #{tpu_custom_call.1} parent=1 // pred_check_branch
      %14 = sbr.rel (0) target = $region9
    $region8: #{tpu_custom_call.1} parent=1 // pred_region
      _
    $region9: #{tpu_custom_call.1} parent=1 // pred_fallthru
      _
    // Predicated region
    $region10: #{tpu_custom_call.1} parent=1 // pred_check
      _
    $region11: #{tpu_custom_call.1} parent=1 // pred_check_branch
      %16 = sbr.rel (0) target = $region13
    $region12: #{tpu_custom_call.1} parent=1 // pred_region
      _
    $region13: #{tpu_custom_call.1} parent=1 // pred_fallthru
      _
    // Predicated region
    $region14: #{tpu_custom_call.1} parent=1 // pred_check
      _
    $region15: #{tpu_custom_call.1} parent=1 // pred_check_branch
      %18 = sbr.rel (0) target = $region17
    $region16: #{tpu_custom_call.1} parent=1 // pred_region
      _
    $region17: #{tpu_custom_call.1} parent=1 // pred_fallthru
      _
    // Predicated region
    $region18: #{tpu_custom_call.1} parent=1 // pred_check
      _
    $region19: #{tpu_custom_call.1} parent=1 // pred_check_branch
      %20 = sbr.rel (0) target = $region21
    $region20: #{tpu_custom_call.1} parent=1 // pred_region
      _
    $region21: #{tpu_custom_call.1} parent=1 // pred_fallthru
      _
    %v22 = vld [vmem:[%s0] sm:$0xf]
    %v23 = vld [vmem:[%s0 + $0x4] sm:$0xf]
    %v24 = vld [vmem:[%s0 + $0x8] sm:$0xf]
    %v25 = vld [vmem:[%s0 + $0xc] sm:$0xf]
    %v26 = vld [vmem:[%s0 + $0x10] sm:$0xf]
    %v27 = vld [vmem:[%s0 + $0x14] sm:$0xf]
    %v28 = vld [vmem:[%s0 + $0x18] sm:$0xf]
    %v29 = vld [vmem:[%s0 + $0x1c] sm:$0xf]
    %v30 = vld [vmem:[%s0 + $0x20] sm:$0xf]
    %v31 = vld [vmem:[%s0 + $0x24] sm:$0xf]
    %v32 = vld [vmem:[%s0 + $0x28] sm:$0xf]
    %v33 = vld [vmem:[%s0 + $0x2c] sm:$0xf]
    %v34 = vld [vmem:[%s0 + $0x30] sm:$0xf]
    %v35 = vld [vmem:[%s0 + $0x34] sm:$0xf]
    %v36 = vld [vmem:[%s0 + $0x38] sm:$0xf]
    %v37 = vld [vmem:[%s0 + $0x3c] sm:$0xf]
    %v38 = vld [vmem:[%s0 + $0x40] sm:$0xf]
    %v39 = vld [vmem:[%s0 + $0x44] sm:$0xf]
    %v40 = vld [vmem:[%s0 + $0x48] sm:$0xf]
    %v41 = vld [vmem:[%s0 + $0x4c] sm:$0xf]
    %v42 = vld [vmem:[%s0 + $0x50] sm:$0xf]
    %v43 = vld [vmem:[%s0 + $0x54] sm:$0xf]
    %v44 = vld [vmem:[%s0 + $0x58] sm:$0xf]
    %v45 = vld [vmem:[%s0 + $0x5c] sm:$0xf]
    %v46 = vld [vmem:[%s0 + $0x60] sm:$0xf]
    %v47 = vld [vmem:[%s0 + $0x64] sm:$0xf]
    %v48 = vld [vmem:[%s0 + $0x68] sm:$0xf]
    %v49 = vld [vmem:[%s0 + $0x6c] sm:$0xf]
    %v50 = vld [vmem:[%s0 + $0x70] sm:$0xf]
    %v51 = vld [vmem:[%s0 + $0x74] sm:$0xf]
    %v52 = vld [vmem:[%s0 + $0x78] sm:$0xf]
    %v53 = vld [vmem:[%s0 + $0x7c] sm:$0xf]
    %v54 = vld [vmem:[%s0 + $0x80] sm:$0xf]
    %v55 = vld [vmem:[%s0 + $0x84] sm:$0xf]
    %v56 = vld [vmem:[%s0 + $0x88] sm:$0xf]
    %v57 = vld [vmem:[%s0 + $0x8c] sm:$0xf]
    %v58 = vld [vmem:[%s0 + $0x90] sm:$0xf]
    %v59 = vld [vmem:[%s0 + $0x94] sm:$0xf]
    %v60 = vld [vmem:[%s0 + $0x98] sm:$0xf]
    %v61 = vld [vmem:[%s0 + $0x9c] sm:$0xf]
    %v62 = vld [vmem:[%s0 + $0xa0] sm:$0xf]
    %v63 = vld [vmem:[%s0 + $0xa4] sm:$0xf]
    %v64 = vld [vmem:[%s0 + $0xa8] sm:$0xf]
    %v65 = vld [vmem:[%s0 + $0xac] sm:$0xf]
    %v66 = vld [vmem:[%s0 + $0xb0] sm:$0xf]
    %v67 = vld [vmem:[%s0 + $0xb4] sm:$0xf]
    %v68 = vld [vmem:[%s0 + $0xb8] sm:$0xf]
    %v69 = vld [vmem:[%s0 + $0xbc] sm:$0xf]
    %v70 = vld [vmem:[%s0 + $0xc0] sm:$0xf]
    %v71 = vld [vmem:[%s0 + $0xc4] sm:$0xf]
    %v72 = vld [vmem:[%s0 + $0xc8] sm:$0xf]
    %v73 = vld [vmem:[%s0 + $0xcc] sm:$0xf]
    %v74 = vld [vmem:[%s0 + $0xd0] sm:$0xf]
    %v75 = vld [vmem:[%s0 + $0xd4] sm:$0xf]
    %v76 = vld [vmem:[%s0 + $0xd8] sm:$0xf]
    %v77 = vld [vmem:[%s0 + $0xdc] sm:$0xf]
    %v78 = vld [vmem:[%s0 + $0xe0] sm:$0xf]
    %v79 = vld [vmem:[%s0 + $0xe4] sm:$0xf]
    %v80 = vld [vmem:[%s0 + $0xe8] sm:$0xf]
    %v81 = vld [vmem:[%s0 + $0xec] sm:$0xf]
    %v82 = vld [vmem:[%s0 + $0xf0] sm:$0xf]
    %v83 = vld [vmem:[%s0 + $0xf4] sm:$0xf]
    %v84 = vld [vmem:[%s0 + $0xf8] sm:$0xf]
    %v85 = vld [vmem:[%s0 + $0xfc] sm:$0xf]
    %v86 = vunpack.c.l.bf16 %v22
    %v87 = vunpack.c.l.bf16 %v23
    %v88 = vunpack.c.l.bf16 %v24
    %v89 = vunpack.c.l.bf16 %v25
    %v90 = vunpack.c.l.bf16 %v26
    %v91 = vunpack.c.l.bf16 %v27
    %v92 = vunpack.c.l.bf16 %v28
    %v93 = vunpack.c.l.bf16 %v29
    %v94 = vunpack.c.l.bf16 %v30
    %v95 = vunpack.c.l.bf16 %v31
    %v96 = vunpack.c.l.bf16 %v32
    %v97 = vunpack.c.l.bf16 %v33
    %v98 = vunpack.c.l.bf16 %v34
    %v99 = vunpack.c.l.bf16 %v35
    %v100 = vunpack.c.l.bf16 %v36
    %v101 = vunpack.c.l.bf16 %v37
    %v102 = vunpack.c.l.bf16 %v38
    %v103 = vunpack.c.l.bf16 %v39
    %v104 = vunpack.c.l.bf16 %v40
    %v105 = vunpack.c.l.bf16 %v41
    %v106 = vunpack.c.l.bf16 %v42
    %v107 = vunpack.c.l.bf16 %v43
    %v108 = vunpack.c.l.bf16 %v44
    %v109 = vunpack.c.l.bf16 %v45
    %v110 = vunpack.c.l.bf16 %v46
    %v111 = vunpack.c.l.bf16 %v47
    %v112 = vunpack.c.l.bf16 %v48
    %v113 = vunpack.c.l.bf16 %v49
    %v114 = vunpack.c.l.bf16 %v50
    %v115 = vunpack.c.l.bf16 %v51
    %v116 = vunpack.c.l.bf16 %v52
    %v117 = vunpack.c.l.bf16 %v53
    %v118 = vunpack.c.l.bf16 %v54
    %v119 = vunpack.c.l.bf16 %v55
    %v120 = vunpack.c.l.bf16 %v56
    %v121 = vunpack.c.l.bf16 %v57
    %v122 = vunpack.c.l.bf16 %v58
    %v123 = vunpack.c.l.bf16 %v59
    %v124 = vunpack.c.l.bf16 %v60
    %v125 = vunpack.c.l.bf16 %v61
    %v126 = vunpack.c.l.bf16 %v62
    %v127 = vunpack.c.l.bf16 %v63
    %v128 = vunpack.c.l.bf16 %v64
    %v129 = vunpack.c.l.bf16 %v65
    %v130 = vunpack.c.l.bf16 %v66
    %v131 = vunpack.c.l.bf16 %v67
    %v132 = vunpack.c.l.bf16 %v68
    %v133 = vunpack.c.l.bf16 %v69
    %v134 = vunpack.c.l.bf16 %v70
    %v135 = vunpack.c.l.bf16 %v71
    %v136 = vunpack.c.l.bf16 %v72
    %v137 = vunpack.c.l.bf16 %v73
    %v138 = vunpack.c.l.bf16 %v74
    %v139 = vunpack.c.l.bf16 %v75
    %v140 = vunpack.c.l.bf16 %v76
    %v141 = vunpack.c.l.bf16 %v77
    %v142 = vunpack.c.l.bf16 %v78
    %v143 = vunpack.c.l.bf16 %v79
    %v144 = vunpack.c.l.bf16 %v80
    %v145 = vunpack.c.l.bf16 %v81
    %v146 = vunpack.c.l.bf16 %v82
    %v147 = vunpack.c.l.bf16 %v83
    %v148 = vunpack.c.l.bf16 %v84
    %v149 = vunpack.c.l.bf16 %v85
    %v150 = vpack.c.bf16 0.0, 0.0
    %v151 = vpack.c.bf16 %v87, %v86
    %v152 = vpack.c.bf16 %v89, %v88
    %v153 = vpack.c.bf16 %v91, %v90
    %v154 = vpack.c.bf16 %v93, %v92
    %v155 = vpack.c.bf16 %v95, %v94
    %v156 = vpack.c.bf16 %v97, %v96
    %v157 = vpack.c.bf16 %v99, %v98
    %v158 = vpack.c.bf16 %v101, %v100
    %v159 = vpack.c.bf16 %v103, %v102
    %v160 = vpack.c.bf16 %v105, %v104
    %v161 = vpack.c.bf16 %v107, %v106
    %v162 = vpack.c.bf16 %v109, %v108
    %v163 = vpack.c.bf16 %v111, %v110
    %v164 = vpack.c.bf16 %v113, %v112
    %v165 = vpack.c.bf16 %v115, %v114
    %v166 = vpack.c.bf16 %v117, %v116
    %v167 = vpack.c.bf16 %v119, %v118
    %v168 = vpack.c.bf16 %v121, %v120
    %v169 = vpack.c.bf16 %v123, %v122
    %v170 = vpack.c.bf16 %v125, %v124
    %v171 = vpack.c.bf16 %v127, %v126
    %v172 = vpack.c.bf16 %v129, %v128
    %v173 = vpack.c.bf16 %v131, %v130
    %v174 = vpack.c.bf16 %v133, %v132
    %v175 = vpack.c.bf16 %v135, %v134
    %v176 = vpack.c.bf16 %v137, %v136
    %v177 = vpack.c.bf16 %v139, %v138
    %v178 = vpack.c.bf16 %v141, %v140
    %v179 = vld [vmem:[%s1] sm:$0xf]
    %v180 = vld [vmem:[%s1 + $0x4] sm:$0xf]
    %v181 = vld [vmem:[%s1 + $0x8] sm:$0xf]
    %v182 = vld [vmem:[%s1 + $0xc] sm:$0xf]
    %v183 = vpack.c.bf16 %v143, %v142
    %v184 = vpack.c.bf16 %v145, %v144
    %v185 = vpack.c.bf16 %v147, %v146
    %v186 = vpack.c.bf16 %v149, %v148
    %s187 = scalar_lea.vmem %s1, 16
    %v188 = vld [vmem:[%s187] sm:$0xf]
    %v189 = vld [vmem:[%s187 + $0x4] sm:$0xf]
    %v190 = vld [vmem:[%s187 + $0x8] sm:$0xf]
    %v191 = vld [vmem:[%s187 + $0xc] sm:$0xf]
    %v196 = vunpack.c.l.b16 %v188
    %v197 = vunpack.c.l.b16 %v189
    %v198 = vunpack.c.l.b16 %v190
    %v199 = vunpack.c.l.b16 %v191
    %v200 = vpack.c.b16 %v197, %v196
    %v201 = vpack.c.b16 %v199, %v198
    %vm204 = vcmask 261120
    %v206 = vsel %vm204, %v151, 0
    %v209 = vsel %vm204, %v152, 0
    %v212 = vsel %vm204, %v153, 0
    %v215 = vsel %vm204, %v154, 0
    %v218 = vsel %vm204, %v155, 0
    %v221 = vsel %vm204, %v156, 0
    %v224 = vsel %vm204, %v157, 0
    %v227 = vsel %vm204, %v158, 0
    %v230 = vsel %vm204, %v159, 0
    %v233 = vsel %vm204, %v160, 0
    %v236 = vsel %vm204, %v161, 0
    %v239 = vsel %vm204, %v162, 0
    %v242 = vsel %vm204, %v163, 0
    %v245 = vsel %vm204, %v164, 0
    %v248 = vsel %vm204, %v165, 0
    %v251 = vsel %vm204, %v166, 0
    %v254 = vsel %vm204, %v167, 0
    %v257 = vsel %vm204, %v168, 0
    %v260 = vsel %vm204, %v169, 0
    %v263 = vsel %vm204, %v170, 0
    %v266 = vsel %vm204, %v171, 0
    %v269 = vsel %vm204, %v172, 0
    %v272 = vsel %vm204, %v173, 0
    %v275 = vsel %vm204, %v174, 0
    %v278 = vsel %vm204, %v175, 0
    %v281 = vsel %vm204, %v176, 0
    %v284 = vsel %vm204, %v177, 0
    %v287 = vsel %vm204, %v178, 0
    %v290 = vsel %vm204, %v183, 0
    %v293 = vsel %vm204, %v184, 0
    %v296 = vsel %vm204, %v185, 0
    %v299 = vsel %vm204, %v186, 0
    %301 = vmatpush.bf16.msra.mxu0 0
    %302 = vmatpush.bf16.msra.mxu0 0
    %303 = vmatpush.bf16.msra.mxu0 0
    %304 = vmatpush.bf16.msra.mxu0 0
    %305 = vmatpush.bf16.msra.mxu0 0
    %306 = vmatpush.bf16.msra.mxu0 0
    %307 = vmatpush.bf16.msra.mxu0 %v201
    %308 = vmatpush.bf16.msra.mxu0 %v200
    %309 = vmatmul.bf16.gmra.mxu0 %v206
    %v310 = vpop.f32.mrf.mxu0
    %v311 = vadd.f32 0.0, %v310
    %v312 = vpop.f32.mrf.mxu0
    %v313 = vadd.f32 0.0, %v312
    %314 = vmatmul.bf16.gmra.mxu0 %v209
    %v315 = vpop.f32.mrf.mxu0
    %v316 = vadd.f32 0.0, %v315
    %v317 = vpop.f32.mrf.mxu0
    %v318 = vadd.f32 0.0, %v317
    %319 = vmatmul.bf16.gmra.mxu0 %v212
    %v320 = vpop.f32.mrf.mxu0
    %v321 = vadd.f32 0.0, %v320
    %v322 = vpop.f32.mrf.mxu0
    %v323 = vadd.f32 0.0, %v322
    %324 = vmatmul.bf16.gmra.mxu0 %v215
    %v325 = vpop.f32.mrf.mxu0
    %v326 = vadd.f32 0.0, %v325
    %v327 = vpop.f32.mrf.mxu0
    %v328 = vadd.f32 0.0, %v327
    %329 = vmatmul.bf16.gmra.mxu0 %v218
    %v330 = vpop.f32.mrf.mxu0
    %v331 = vadd.f32 0.0, %v330
    %v332 = vpop.f32.mrf.mxu0
    %v333 = vadd.f32 0.0, %v332
    %334 = vmatmul.bf16.gmra.mxu0 %v221
    %v335 = vpop.f32.mrf.mxu0
    %v336 = vadd.f32 0.0, %v335
    %v337 = vpop.f32.mrf.mxu0
    %v338 = vadd.f32 0.0, %v337
    %339 = vmatmul.bf16.gmra.mxu0 %v224
    %v340 = vpop.f32.mrf.mxu0
    %v341 = vadd.f32 0.0, %v340
    %v342 = vpop.f32.mrf.mxu0
    %v343 = vadd.f32 0.0, %v342
    %344 = vmatmul.bf16.gmra.mxu0 %v227
    %v345 = vpop.f32.mrf.mxu0
    %v346 = vadd.f32 0.0, %v345
    %v347 = vpop.f32.mrf.mxu0
    %v348 = vadd.f32 0.0, %v347
    %349 = vmatmul.bf16.gmra.mxu0 %v230
    %v350 = vpop.f32.mrf.mxu0
    %v351 = vadd.f32 0.0, %v350
    %v352 = vpop.f32.mrf.mxu0
    %v353 = vadd.f32 0.0, %v352
    %354 = vmatmul.bf16.gmra.mxu0 %v233
    %v355 = vpop.f32.mrf.mxu0
    %v356 = vadd.f32 0.0, %v355
    %v357 = vpop.f32.mrf.mxu0
    %v358 = vadd.f32 0.0, %v357
    %359 = vmatmul.bf16.gmra.mxu0 %v236
    %v360 = vpop.f32.mrf.mxu0
    %v361 = vadd.f32 0.0, %v360
    %v362 = vpop.f32.mrf.mxu0
    %v363 = vadd.f32 0.0, %v362
    %364 = vmatmul.bf16.gmra.mxu0 %v239
    %v365 = vpop.f32.mrf.mxu0
    %v366 = vadd.f32 0.0, %v365
    %v367 = vpop.f32.mrf.mxu0
    %v368 = vadd.f32 0.0, %v367
    %369 = vmatmul.bf16.gmra.mxu0 %v242
    %v370 = vpop.f32.mrf.mxu0
    %v371 = vadd.f32 0.0, %v370
    %v372 = vpop.f32.mrf.mxu0
    %v373 = vadd.f32 0.0, %v372
    %374 = vmatmul.bf16.gmra.mxu0 %v245
    %v375 = vpop.f32.mrf.mxu0
    %v376 = vadd.f32 0.0, %v375
    %v377 = vpop.f32.mrf.mxu0
    %v378 = vadd.f32 0.0, %v377
    %379 = vmatmul.bf16.gmra.mxu0 %v248
    %v380 = vpop.f32.mrf.mxu0
    %v381 = vadd.f32 0.0, %v380
    %v382 = vpop.f32.mrf.mxu0
    %v383 = vadd.f32 0.0, %v382
    %384 = vmatmul.bf16.gmra.mxu0 %v251
    %v385 = vpop.f32.mrf.mxu0
    %v386 = vadd.f32 0.0, %v385
    %v387 = vpop.f32.mrf.mxu0
    %v388 = vadd.f32 0.0, %v387
    %389 = vmatmul.bf16.gmra.mxu0 %v254
    %v390 = vpop.f32.mrf.mxu0
    %v391 = vadd.f32 0.0, %v390
    %v392 = vpop.f32.mrf.mxu0
    %v393 = vadd.f32 0.0, %v392
    %394 = vmatmul.bf16.gmra.mxu0 %v257
    %v395 = vpop.f32.mrf.mxu0
    %v396 = vadd.f32 0.0, %v395
    %v397 = vpop.f32.mrf.mxu0
    %v398 = vadd.f32 0.0, %v397
    %399 = vmatmul.bf16.gmra.mxu0 %v260
    %v400 = vpop.f32.mrf.mxu0
    %v401 = vadd.f32 0.0, %v400
    %v402 = vpop.f32.mrf.mxu0
    %v403 = vadd.f32 0.0, %v402
    %404 = vmatmul.bf16.gmra.mxu0 %v263
    %v405 = vpop.f32.mrf.mxu0
    %v406 = vadd.f32 0.0, %v405
    %v407 = vpop.f32.mrf.mxu0
    %v408 = vadd.f32 0.0, %v407
    %409 = vmatmul.bf16.gmra.mxu0 %v266
    %v410 = vpop.f32.mrf.mxu0
    %v411 = vadd.f32 0.0, %v410
    %v412 = vpop.f32.mrf.mxu0
    %v413 = vadd.f32 0.0, %v412
    %414 = vmatmul.bf16.gmra.mxu0 %v269
    %v415 = vpop.f32.mrf.mxu0
    %v416 = vadd.f32 0.0, %v415
    %v417 = vpop.f32.mrf.mxu0
    %v418 = vadd.f32 0.0, %v417
    %419 = vmatmul.bf16.gmra.mxu0 %v272
    %v420 = vpop.f32.mrf.mxu0
    %v421 = vadd.f32 0.0, %v420
    %v422 = vpop.f32.mrf.mxu0
    %v423 = vadd.f32 0.0, %v422
    %424 = vmatmul.bf16.gmra.mxu0 %v275
    %v425 = vpop.f32.mrf.mxu0
    %v426 = vadd.f32 0.0, %v425
    %v427 = vpop.f32.mrf.mxu0
    %v428 = vadd.f32 0.0, %v427
    %429 = vmatmul.bf16.gmra.mxu0 %v278
    %v430 = vpop.f32.mrf.mxu0
    %v431 = vadd.f32 0.0, %v430
    %v432 = vpop.f32.mrf.mxu0
    %v433 = vadd.f32 0.0, %v432
    %434 = vmatmul.bf16.gmra.mxu0 %v281
    %v435 = vpop.f32.mrf.mxu0
    %v436 = vadd.f32 0.0, %v435
    %v437 = vpop.f32.mrf.mxu0
    %v438 = vadd.f32 0.0, %v437
    %439 = vmatmul.bf16.gmra.mxu0 %v284
    %v440 = vpop.f32.mrf.mxu0
    %v441 = vadd.f32 0.0, %v440
    %v442 = vpop.f32.mrf.mxu0
    %v443 = vadd.f32 0.0, %v442
    %444 = vmatmul.bf16.gmra.mxu0 %v287
    %v445 = vpop.f32.mrf.mxu0
    %v446 = vadd.f32 0.0, %v445
    %v447 = vpop.f32.mrf.mxu0
    %v448 = vadd.f32 0.0, %v447
    %449 = vmatmul.bf16.gmra.mxu0 %v290
    %v450 = vpop.f32.mrf.mxu0
    %v451 = vadd.f32 0.0, %v450
    %v452 = vpop.f32.mrf.mxu0
    %v453 = vadd.f32 0.0, %v452
    %454 = vmatmul.bf16.gmra.mxu0 %v293
    %v455 = vpop.f32.mrf.mxu0
    %v456 = vadd.f32 0.0, %v455
    %v457 = vpop.f32.mrf.mxu0
    %v458 = vadd.f32 0.0, %v457
    %459 = vmatmul.bf16.gmra.mxu0 %v296
    %v460 = vpop.f32.mrf.mxu0
    %v461 = vadd.f32 0.0, %v460
    %v462 = vpop.f32.mrf.mxu0
    %v463 = vadd.f32 0.0, %v462
    %464 = vmatmul.bf16.gmra.mxu0 %v299
    %v465 = vpop.f32.mrf.mxu0
    %v466 = vadd.f32 0.0, %v465
    %v467 = vpop.f32.mrf.mxu0
    %v468 = vadd.f32 0.0, %v467
    %469 = vdwg.mxu0
    %v474 = vunpack.c.l.b16 %v179
    %v475 = vunpack.c.l.b16 %v180
    %v476 = vunpack.c.l.b16 %v181
    %v477 = vunpack.c.l.b16 %v182
    %v478 = vpack.c.b16 %v475, %v474
    %v479 = vpack.c.b16 %v477, %v476
    %v483 = vsel %vm204, %v150, 0
    %485 = vmatpush.bf16.msra.mxu0 0
    %486 = vmatpush.bf16.msra.mxu0 0
    %487 = vmatpush.bf16.msra.mxu0 0
    %488 = vmatpush.bf16.msra.mxu0 0
    %489 = vmatpush.bf16.msra.mxu0 0
    %490 = vmatpush.bf16.msra.mxu0 0
    %491 = vmatpush.bf16.msra.mxu0 %v479
    %492 = vmatpush.bf16.msra.mxu0 %v478
    %493 = vmatmul.bf16.gmra.mxu0 %v483
    %v494 = vpop.f32.mrf.mxu0
    %v495 = vadd.f32 %v311, %v494
    %v496 = vpop.f32.mrf.mxu0
    %v497 = vadd.f32 %v313, %v496
    %498 = vmatmul.bf16.gmra.mxu0 %v483
    %v499 = vpop.f32.mrf.mxu0
    %v500 = vadd.f32 %v316, %v499
    %v501 = vpop.f32.mrf.mxu0
    %v502 = vadd.f32 %v318, %v501
    %503 = vmatmul.bf16.gmra.mxu0 %v483
    %v504 = vpop.f32.mrf.mxu0
    %v505 = vadd.f32 %v321, %v504
    %v506 = vpop.f32.mrf.mxu0
    %v507 = vadd.f32 %v323, %v506
    %508 = vmatmul.bf16.gmra.mxu0 %v483
    %v509 = vpop.f32.mrf.mxu0
    %v510 = vadd.f32 %v326, %v509
    %v511 = vpop.f32.mrf.mxu0
    %v512 = vadd.f32 %v328, %v511
    %513 = vmatmul.bf16.gmra.mxu0 %v206
    %v514 = vpop.f32.mrf.mxu0
    %v515 = vadd.f32 %v331, %v514
    %v516 = vpop.f32.mrf.mxu0
    %v517 = vadd.f32 %v333, %v516
    %518 = vmatmul.bf16.gmra.mxu0 %v209
    %v519 = vpop.f32.mrf.mxu0
    %v520 = vadd.f32 %v336, %v519
    %v521 = vpop.f32.mrf.mxu0
    %v522 = vadd.f32 %v338, %v521
    %523 = vmatmul.bf16.gmra.mxu0 %v212
    %v524 = vpop.f32.mrf.mxu0
    %v525 = vadd.f32 %v341, %v524
    %v526 = vpop.f32.mrf.mxu0
    %v527 = vadd.f32 %v343, %v526
    %528 = vmatmul.bf16.gmra.mxu0 %v215
    %v529 = vpop.f32.mrf.mxu0
    %v530 = vadd.f32 %v346, %v529
    %v531 = vpop.f32.mrf.mxu0
    %v532 = vadd.f32 %v348, %v531
    %533 = vmatmul.bf16.gmra.mxu0 %v218
    %v534 = vpop.f32.mrf.mxu0
    %v535 = vadd.f32 %v351, %v534
    %v536 = vpop.f32.mrf.mxu0
    %v537 = vadd.f32 %v353, %v536
    %538 = vmatmul.bf16.gmra.mxu0 %v221
    %v539 = vpop.f32.mrf.mxu0
    %v540 = vadd.f32 %v356, %v539
    %v541 = vpop.f32.mrf.mxu0
    %v542 = vadd.f32 %v358, %v541
    %543 = vmatmul.bf16.gmra.mxu0 %v224
    %v544 = vpop.f32.mrf.mxu0
    %v545 = vadd.f32 %v361, %v544
    %v546 = vpop.f32.mrf.mxu0
    %v547 = vadd.f32 %v363, %v546
    %548 = vmatmul.bf16.gmra.mxu0 %v227
    %v549 = vpop.f32.mrf.mxu0
    %v550 = vadd.f32 %v366, %v549
    %v551 = vpop.f32.mrf.mxu0
    %v552 = vadd.f32 %v368, %v551
    %553 = vmatmul.bf16.gmra.mxu0 %v230
    %v554 = vpop.f32.mrf.mxu0
    %v555 = vadd.f32 %v371, %v554
    %v556 = vpop.f32.mrf.mxu0
    %v557 = vadd.f32 %v373, %v556
    %558 = vmatmul.bf16.gmra.mxu0 %v233
    %v559 = vpop.f32.mrf.mxu0
    %v560 = vadd.f32 %v376, %v559
    %v561 = vpop.f32.mrf.mxu0
    %v562 = vadd.f32 %v378, %v561
    %563 = vmatmul.bf16.gmra.mxu0 %v236
    %v564 = vpop.f32.mrf.mxu0
    %v565 = vadd.f32 %v381, %v564
    %v566 = vpop.f32.mrf.mxu0
    %v567 = vadd.f32 %v383, %v566
    %568 = vmatmul.bf16.gmra.mxu0 %v239
    %v569 = vpop.f32.mrf.mxu0
    %v570 = vadd.f32 %v386, %v569
    %v571 = vpop.f32.mrf.mxu0
    %v572 = vadd.f32 %v388, %v571
    %573 = vmatmul.bf16.gmra.mxu0 %v242
    %v574 = vpop.f32.mrf.mxu0
    %v575 = vadd.f32 %v391, %v574
    %v576 = vpop.f32.mrf.mxu0
    %v577 = vadd.f32 %v393, %v576
    %578 = vmatmul.bf16.gmra.mxu0 %v245
    %v579 = vpop.f32.mrf.mxu0
    %v580 = vadd.f32 %v396, %v579
    %v581 = vpop.f32.mrf.mxu0
    %v582 = vadd.f32 %v398, %v581
    %583 = vmatmul.bf16.gmra.mxu0 %v248
    %v584 = vpop.f32.mrf.mxu0
    %v585 = vadd.f32 %v401, %v584
    %v586 = vpop.f32.mrf.mxu0
    %v587 = vadd.f32 %v403, %v586
    %588 = vmatmul.bf16.gmra.mxu0 %v251
    %v589 = vpop.f32.mrf.mxu0
    %v590 = vadd.f32 %v406, %v589
    %v591 = vpop.f32.mrf.mxu0
    %v592 = vadd.f32 %v408, %v591
    %593 = vmatmul.bf16.gmra.mxu0 %v254
    %v594 = vpop.f32.mrf.mxu0
    %v595 = vadd.f32 %v411, %v594
    %v596 = vpop.f32.mrf.mxu0
    %v597 = vadd.f32 %v413, %v596
    %598 = vmatmul.bf16.gmra.mxu0 %v257
    %v599 = vpop.f32.mrf.mxu0
    %v600 = vadd.f32 %v416, %v599
    %v601 = vpop.f32.mrf.mxu0
    %v602 = vadd.f32 %v418, %v601
    %603 = vmatmul.bf16.gmra.mxu0 %v260
    %v604 = vpop.f32.mrf.mxu0
    %v605 = vadd.f32 %v421, %v604
    %v606 = vpop.f32.mrf.mxu0
    %v607 = vadd.f32 %v423, %v606
    %608 = vmatmul.bf16.gmra.mxu0 %v263
    %v609 = vpop.f32.mrf.mxu0
    %v610 = vadd.f32 %v426, %v609
    %v611 = vpop.f32.mrf.mxu0
    %v612 = vadd.f32 %v428, %v611
    %613 = vmatmul.bf16.gmra.mxu0 %v266
    %v614 = vpop.f32.mrf.mxu0
    %v615 = vadd.f32 %v431, %v614
    %v616 = vpop.f32.mrf.mxu0
    %v617 = vadd.f32 %v433, %v616
    %618 = vmatmul.bf16.gmra.mxu0 %v269
    %v619 = vpop.f32.mrf.mxu0
    %v620 = vadd.f32 %v436, %v619
    %v621 = vpop.f32.mrf.mxu0
    %v622 = vadd.f32 %v438, %v621
    %623 = vmatmul.bf16.gmra.mxu0 %v272
    %v624 = vpop.f32.mrf.mxu0
    %v625 = vadd.f32 %v441, %v624
    %v626 = vpop.f32.mrf.mxu0
    %v627 = vadd.f32 %v443, %v626
    %628 = vmatmul.bf16.gmra.mxu0 %v275
    %v629 = vpop.f32.mrf.mxu0
    %v630 = vadd.f32 %v446, %v629
    %v631 = vpop.f32.mrf.mxu0
    %v632 = vadd.f32 %v448, %v631
    %633 = vmatmul.bf16.gmra.mxu0 %v278
    %v634 = vpop.f32.mrf.mxu0
    %v635 = vadd.f32 %v451, %v634
    %v636 = vpop.f32.mrf.mxu0
    %v637 = vadd.f32 %v453, %v636
    %638 = vmatmul.bf16.gmra.mxu0 %v281
    %v639 = vpop.f32.mrf.mxu0
    %v640 = vadd.f32 %v456, %v639
    %v641 = vpop.f32.mrf.mxu0
    %v642 = vadd.f32 %v458, %v641
    %643 = vmatmul.bf16.gmra.mxu0 %v284
    %v644 = vpop.f32.mrf.mxu0
    %v645 = vadd.f32 %v461, %v644
    %v646 = vpop.f32.mrf.mxu0
    %v647 = vadd.f32 %v463, %v646
    %648 = vmatmul.bf16.gmra.mxu0 %v287
    %v649 = vpop.f32.mrf.mxu0
    %v650 = vadd.f32 %v466, %v649
    %v651 = vpop.f32.mrf.mxu0
    %v652 = vadd.f32 %v468, %v651
    %653 = vdwg.mxu0
    %s654 = scalar_lea.vmem %s1, 32
    %v655 = vld [vmem:[%s654] sm:$0xf]
    %v656 = vld [vmem:[%s654 + $0x4] sm:$0xf]
    %v657 = vld [vmem:[%s654 + $0x8] sm:$0xf]
    %v658 = vld [vmem:[%s654 + $0xc] sm:$0xf]
    %v663 = vunpack.c.l.b16 %v655
    %v664 = vunpack.c.l.b16 %v656
    %v665 = vunpack.c.l.b16 %v657
    %v666 = vunpack.c.l.b16 %v658
    %v667 = vpack.c.b16 %v664, %v663
    %v668 = vpack.c.b16 %v666, %v665
    %671 = vmatpush.bf16.msra.mxu0 0
    %672 = vmatpush.bf16.msra.mxu0 0
    %673 = vmatpush.bf16.msra.mxu0 0
    %674 = vmatpush.bf16.msra.mxu0 0
    %675 = vmatpush.bf16.msra.mxu0 0
    %676 = vmatpush.bf16.msra.mxu0 0
    %677 = vmatpush.bf16.msra.mxu0 %v668
    %678 = vmatpush.bf16.msra.mxu0 %v667
    %679 = vmatmul.bf16.gmra.mxu0 %v218
    %v680 = vpop.f32.mrf.mxu0
    %v681 = vadd.f32 0.0, %v680
    %v682 = vpop.f32.mrf.mxu0
    %v683 = vadd.f32 0.0, %v682
    %684 = vmatmul.bf16.gmra.mxu0 %v221
    %v685 = vpop.f32.mrf.mxu0
    %v686 = vadd.f32 0.0, %v685
    %v687 = vpop.f32.mrf.mxu0
    %v688 = vadd.f32 0.0, %v687
    %689 = vmatmul.bf16.gmra.mxu0 %v224
    %v690 = vpop.f32.mrf.mxu0
    %v691 = vadd.f32 0.0, %v690
    %v692 = vpop.f32.mrf.mxu0
    %v693 = vadd.f32 0.0, %v692
    %694 = vmatmul.bf16.gmra.mxu0 %v227
    %v695 = vpop.f32.mrf.mxu0
    %v696 = vadd.f32 0.0, %v695
    %v697 = vpop.f32.mrf.mxu0
    %v698 = vadd.f32 0.0, %v697
    %699 = vmatmul.bf16.gmra.mxu0 %v230
    %v700 = vpop.f32.mrf.mxu0
    %v701 = vadd.f32 0.0, %v700
    %v702 = vpop.f32.mrf.mxu0
    %v703 = vadd.f32 0.0, %v702
    %704 = vmatmul.bf16.gmra.mxu0 %v233
    %v705 = vpop.f32.mrf.mxu0
    %v706 = vadd.f32 0.0, %v705
    %v707 = vpop.f32.mrf.mxu0
    %v708 = vadd.f32 0.0, %v707
    %709 = vmatmul.bf16.gmra.mxu0 %v236
    %v710 = vpop.f32.mrf.mxu0
    %v711 = vadd.f32 0.0, %v710
    %v712 = vpop.f32.mrf.mxu0
    %v713 = vadd.f32 0.0, %v712
    %714 = vmatmul.bf16.gmra.mxu0 %v239
    %v715 = vpop.f32.mrf.mxu0
    %v716 = vadd.f32 0.0, %v715
    %v717 = vpop.f32.mrf.mxu0
    %v718 = vadd.f32 0.0, %v717
    %719 = vmatmul.bf16.gmra.mxu0 %v242
    %v720 = vpop.f32.mrf.mxu0
    %v721 = vadd.f32 0.0, %v720
    %v722 = vpop.f32.mrf.mxu0
    %v723 = vadd.f32 0.0, %v722
    %724 = vmatmul.bf16.gmra.mxu0 %v245
    %v725 = vpop.f32.mrf.mxu0
    %v726 = vadd.f32 0.0, %v725
    %v727 = vpop.f32.mrf.mxu0
    %v728 = vadd.f32 0.0, %v727
    %729 = vmatmul.bf16.gmra.mxu0 %v248
    %v730 = vpop.f32.mrf.mxu0
    %v731 = vadd.f32 0.0, %v730
    %v732 = vpop.f32.mrf.mxu0
    %v733 = vadd.f32 0.0, %v732
    %734 = vmatmul.bf16.gmra.mxu0 %v251
    %v735 = vpop.f32.mrf.mxu0
    %v736 = vadd.f32 0.0, %v735
    %v737 = vpop.f32.mrf.mxu0
    %v738 = vadd.f32 0.0, %v737
    %739 = vmatmul.bf16.gmra.mxu0 %v254
    %v740 = vpop.f32.mrf.mxu0
    %v741 = vadd.f32 0.0, %v740
    %v742 = vpop.f32.mrf.mxu0
    %v743 = vadd.f32 0.0, %v742
    %744 = vmatmul.bf16.gmra.mxu0 %v257
    %v745 = vpop.f32.mrf.mxu0
    %v746 = vadd.f32 0.0, %v745
    %v747 = vpop.f32.mrf.mxu0
    %v748 = vadd.f32 0.0, %v747
    %749 = vmatmul.bf16.gmra.mxu0 %v260
    %v750 = vpop.f32.mrf.mxu0
    %v751 = vadd.f32 0.0, %v750
    %v752 = vpop.f32.mrf.mxu0
    %v753 = vadd.f32 0.0, %v752
    %754 = vmatmul.bf16.gmra.mxu0 %v263
    %v755 = vpop.f32.mrf.mxu0
    %v756 = vadd.f32 0.0, %v755
    %v757 = vpop.f32.mrf.mxu0
    %v758 = vadd.f32 0.0, %v757
    %759 = vmatmul.bf16.gmra.mxu0 %v266
    %v760 = vpop.f32.mrf.mxu0
    %v761 = vadd.f32 0.0, %v760
    %v762 = vpop.f32.mrf.mxu0
    %v763 = vadd.f32 0.0, %v762
    %764 = vmatmul.bf16.gmra.mxu0 %v269
    %v765 = vpop.f32.mrf.mxu0
    %v766 = vadd.f32 0.0, %v765
    %v767 = vpop.f32.mrf.mxu0
    %v768 = vadd.f32 0.0, %v767
    %769 = vmatmul.bf16.gmra.mxu0 %v272
    %v770 = vpop.f32.mrf.mxu0
    %v771 = vadd.f32 0.0, %v770
    %v772 = vpop.f32.mrf.mxu0
    %v773 = vadd.f32 0.0, %v772
    %774 = vmatmul.bf16.gmra.mxu0 %v275
    %v775 = vpop.f32.mrf.mxu0
    %v776 = vadd.f32 0.0, %v775
    %v777 = vpop.f32.mrf.mxu0
    %v778 = vadd.f32 0.0, %v777
    %779 = vmatmul.bf16.gmra.mxu0 %v278
    %v780 = vpop.f32.mrf.mxu0
    %v781 = vadd.f32 0.0, %v780
    %v782 = vpop.f32.mrf.mxu0
    %v783 = vadd.f32 0.0, %v782
    %784 = vmatmul.bf16.gmra.mxu0 %v281
    %v785 = vpop.f32.mrf.mxu0
    %v786 = vadd.f32 0.0, %v785
    %v787 = vpop.f32.mrf.mxu0
    %v788 = vadd.f32 0.0, %v787
    %789 = vmatmul.bf16.gmra.mxu0 %v284
    %v790 = vpop.f32.mrf.mxu0
    %v791 = vadd.f32 0.0, %v790
    %v792 = vpop.f32.mrf.mxu0
    %v793 = vadd.f32 0.0, %v792
    %794 = vmatmul.bf16.gmra.mxu0 %v287
    %v795 = vpop.f32.mrf.mxu0
    %v796 = vadd.f32 0.0, %v795
    %v797 = vpop.f32.mrf.mxu0
    %v798 = vadd.f32 0.0, %v797
    %799 = vmatmul.bf16.gmra.mxu0 %v290
    %v800 = vpop.f32.mrf.mxu0
    %v801 = vadd.f32 0.0, %v800
    %v802 = vpop.f32.mrf.mxu0
    %v803 = vadd.f32 0.0, %v802
    %804 = vmatmul.bf16.gmra.mxu0 %v293
    %v805 = vpop.f32.mrf.mxu0
    %v806 = vadd.f32 0.0, %v805
    %v807 = vpop.f32.mrf.mxu0
    %v808 = vadd.f32 0.0, %v807
    %809 = vmatmul.bf16.gmra.mxu0 %v296
    %v810 = vpop.f32.mrf.mxu0
    %v811 = vadd.f32 0.0, %v810
    %v812 = vpop.f32.mrf.mxu0
    %v813 = vadd.f32 0.0, %v812
    %814 = vmatmul.bf16.gmra.mxu0 %v299
    %v815 = vpop.f32.mrf.mxu0
    %v816 = vadd.f32 0.0, %v815
    %v817 = vpop.f32.mrf.mxu0
    %v818 = vadd.f32 0.0, %v817
    %819 = vmatmul.bf16.gmra.mxu0 %v483
    %v820 = vpop.f32.mrf.mxu0
    %v821 = vadd.f32 0.0, %v820
    %v822 = vpop.f32.mrf.mxu0
    %v823 = vadd.f32 0.0, %v822
    %824 = vmatmul.bf16.gmra.mxu0 %v483
    %v825 = vpop.f32.mrf.mxu0
    %v826 = vadd.f32 0.0, %v825
    %v827 = vpop.f32.mrf.mxu0
    %v828 = vadd.f32 0.0, %v827
    %829 = vmatmul.bf16.gmra.mxu0 %v483
    %v830 = vpop.f32.mrf.mxu0
    %v831 = vadd.f32 0.0, %v830
    %v832 = vpop.f32.mrf.mxu0
    %v833 = vadd.f32 0.0, %v832
    %834 = vmatmul.bf16.gmra.mxu0 %v483
    %v835 = vpop.f32.mrf.mxu0
    %v836 = vadd.f32 0.0, %v835
    %v837 = vpop.f32.mrf.mxu0
    %v838 = vadd.f32 0.0, %v837
    %839 = vdwg.mxu0
    %v840 = vadd.f32 %v495, %v681
    %v841 = vadd.f32 %v497, %v683
    %v842 = vadd.f32 %v500, %v686
    %v843 = vadd.f32 %v502, %v688
    %v844 = vadd.f32 %v505, %v691
    %v845 = vadd.f32 %v507, %v693
    %v846 = vadd.f32 %v510, %v696
    %v847 = vadd.f32 %v512, %v698
    %v848 = vadd.f32 %v515, %v701
    %v849 = vadd.f32 %v517, %v703
    %v850 = vadd.f32 %v520, %v706
    %v851 = vadd.f32 %v522, %v708
    %v852 = vadd.f32 %v525, %v711
    %v853 = vadd.f32 %v527, %v713
    %v854 = vadd.f32 %v530, %v716
    %v855 = vadd.f32 %v532, %v718
    %v856 = vadd.f32 %v535, %v721
    %v857 = vadd.f32 %v537, %v723
    %v858 = vadd.f32 %v540, %v726
    %v859 = vadd.f32 %v542, %v728
    %v860 = vadd.f32 %v545, %v731
    %v861 = vadd.f32 %v547, %v733
    %v862 = vadd.f32 %v550, %v736
    %v863 = vadd.f32 %v552, %v738
    %v864 = vadd.f32 %v555, %v741
    %v865 = vadd.f32 %v557, %v743
    %v866 = vadd.f32 %v560, %v746
    %v867 = vadd.f32 %v562, %v748
    %v868 = vadd.f32 %v565, %v751
    %v869 = vadd.f32 %v567, %v753
    %v870 = vadd.f32 %v570, %v756
    %v871 = vadd.f32 %v572, %v758
    %v872 = vadd.f32 %v575, %v761
    %v873 = vadd.f32 %v577, %v763
    %v874 = vadd.f32 %v580, %v766
    %v875 = vadd.f32 %v582, %v768
    %v876 = vadd.f32 %v585, %v771
    %v877 = vadd.f32 %v587, %v773
    %v878 = vadd.f32 %v590, %v776
    %v879 = vadd.f32 %v592, %v778
    %v880 = vadd.f32 %v595, %v781
    %v881 = vadd.f32 %v597, %v783
    %v882 = vadd.f32 %v600, %v786
    %v883 = vadd.f32 %v602, %v788
    %v884 = vadd.f32 %v605, %v791
    %v885 = vadd.f32 %v607, %v793
    %v886 = vadd.f32 %v610, %v796
    %v887 = vadd.f32 %v612, %v798
    %v888 = vadd.f32 %v615, %v801
    %v889 = vadd.f32 %v617, %v803
    %v890 = vadd.f32 %v620, %v806
    %v891 = vadd.f32 %v622, %v808
    %v892 = vadd.f32 %v625, %v811
    %v893 = vadd.f32 %v627, %v813
    %v894 = vadd.f32 %v630, %v816
    %v895 = vadd.f32 %v632, %v818
    %v896 = vadd.f32 %v635, %v821
    %v897 = vadd.f32 %v637, %v823
    %v898 = vadd.f32 %v640, %v826
    %v899 = vadd.f32 %v642, %v828
    %v900 = vadd.f32 %v645, %v831
    %v901 = vadd.f32 %v647, %v833
    %v902 = vadd.f32 %v650, %v836
    %v903 = vadd.f32 %v652, %v838
    %v904 = vld [vmem:[%s2] sm:$0xff]
    %v906 = vrot.slane %v904, 1
    %v907 = vrot.slane %v904, 2
    %v908 = vrot.slane %v904, 3
    %v909 = vrot.slane %v904, 4
    %v910 = vrot.slane %v904, 5
    %v911 = vrot.slane %v904, 6
    %v912 = vrot.slane %v904, 7
    %v913 = vperm.slane %v904, 0
    %v914 = vperm.slane %v906, 0
    %v915 = vperm.slane %v907, 0
    %v916 = vperm.slane %v908, 0
    %v917 = vperm.slane %v909, 0
    %v918 = vperm.slane %v910, 0
    %v919 = vperm.slane %v911, 0
    %v920 = vperm.slane %v912, 0
    %v929 = vadd.f32 %v840, %v913
    %v930 = vadd.f32 %v841, %v913
    %v931 = vadd.f32 %v842, %v913
    %v932 = vadd.f32 %v843, %v913
    %v933 = vadd.f32 %v844, %v913
    %v934 = vadd.f32 %v845, %v913
    %v935 = vadd.f32 %v846, %v913
    %v936 = vadd.f32 %v847, %v913
    %v937 = vadd.f32 %v848, %v914
    %v938 = vadd.f32 %v849, %v914
    %v939 = vadd.f32 %v850, %v914
    %v940 = vadd.f32 %v851, %v914
    %v941 = vadd.f32 %v852, %v914
    %v942 = vadd.f32 %v853, %v914
    %v943 = vadd.f32 %v854, %v914
    %v944 = vadd.f32 %v855, %v914
    %v945 = vadd.f32 %v856, %v915
    %v946 = vadd.f32 %v857, %v915
    %v947 = vadd.f32 %v858, %v915
    %v948 = vadd.f32 %v859, %v915
    %v949 = vadd.f32 %v860, %v915
    %v950 = vadd.f32 %v861, %v915
    %v951 = vadd.f32 %v862, %v915
    %v952 = vadd.f32 %v863, %v915
    %v953 = vadd.f32 %v864, %v916
    %v954 = vadd.f32 %v865, %v916
    %v955 = vadd.f32 %v866, %v916
    %v956 = vadd.f32 %v867, %v916
    %v957 = vadd.f32 %v868, %v916
    %v958 = vadd.f32 %v869, %v916
    %v959 = vadd.f32 %v870, %v916
    %v960 = vadd.f32 %v871, %v916
    %v961 = vadd.f32 %v872, %v917
    %v962 = vadd.f32 %v873, %v917
    %v963 = vadd.f32 %v874, %v917
    %v964 = vadd.f32 %v875, %v917
    %v965 = vadd.f32 %v876, %v917
    %v966 = vadd.f32 %v877, %v917
    %v967 = vadd.f32 %v878, %v917
    %v968 = vadd.f32 %v879, %v917
    %v969 = vadd.f32 %v880, %v918
    %v970 = vadd.f32 %v881, %v918
    %v971 = vadd.f32 %v882, %v918
    %v972 = vadd.f32 %v883, %v918
    %v973 = vadd.f32 %v884, %v918
    %v974 = vadd.f32 %v885, %v918
    %v975 = vadd.f32 %v886, %v918
    %v976 = vadd.f32 %v887, %v918
    %v977 = vadd.f32 %v888, %v919
    %v978 = vadd.f32 %v889, %v919
    %v979 = vadd.f32 %v890, %v919
    %v980 = vadd.f32 %v891, %v919
    %v981 = vadd.f32 %v892, %v919
    %v982 = vadd.f32 %v893, %v919
    %v983 = vadd.f32 %v894, %v919
    %v984 = vadd.f32 %v895, %v919
    %v985 = vadd.f32 %v896, %v920
    %v986 = vadd.f32 %v897, %v920
    %v987 = vadd.f32 %v898, %v920
    %v988 = vadd.f32 %v899, %v920
    %v989 = vadd.f32 %v900, %v920
    %v990 = vadd.f32 %v901, %v920
    %v991 = vadd.f32 %v902, %v920
    %v992 = vadd.f32 %v903, %v920
    %v993 = vmax.f32 %v929, 0.0
    %v994 = vmax.f32 %v930, 0.0
    %v995 = vmax.f32 %v931, 0.0
    %v996 = vmax.f32 %v932, 0.0
    %v997 = vmax.f32 %v933, 0.0
    %v998 = vmax.f32 %v934, 0.0
    %v999 = vmax.f32 %v935, 0.0
    %v1000 = vmax.f32 %v936, 0.0
    %v1001 = vmax.f32 %v937, 0.0
    %v1002 = vmax.f32 %v938, 0.0
    %v1003 = vmax.f32 %v939, 0.0
    %v1004 = vmax.f32 %v940, 0.0
    %v1005 = vmax.f32 %v941, 0.0
    %v1006 = vmax.f32 %v942, 0.0
    %v1007 = vmax.f32 %v943, 0.0
    %v1008 = vmax.f32 %v944, 0.0
    %v1009 = vmax.f32 %v945, 0.0
    %v1010 = vmax.f32 %v946, 0.0
    %v1011 = vmax.f32 %v947, 0.0
    %v1012 = vmax.f32 %v948, 0.0
    %v1013 = vmax.f32 %v949, 0.0
    %v1014 = vmax.f32 %v950, 0.0
    %v1015 = vmax.f32 %v951, 0.0
    %v1016 = vmax.f32 %v952, 0.0
    %v1017 = vmax.f32 %v953, 0.0
    %v1018 = vmax.f32 %v954, 0.0
    %v1019 = vmax.f32 %v955, 0.0
    %v1020 = vmax.f32 %v956, 0.0
    %v1021 = vmax.f32 %v957, 0.0
    %v1022 = vmax.f32 %v958, 0.0
    %v1023 = vmax.f32 %v959, 0.0
    %v1024 = vmax.f32 %v960, 0.0
    %v1025 = vmax.f32 %v961, 0.0
    %v1026 = vmax.f32 %v962, 0.0
    %v1027 = vmax.f32 %v963, 0.0
    %v1028 = vmax.f32 %v964, 0.0
    %v1029 = vmax.f32 %v965, 0.0
    %v1030 = vmax.f32 %v966, 0.0
    %v1031 = vmax.f32 %v967, 0.0
    %v1032 = vmax.f32 %v968, 0.0
    %v1033 = vmax.f32 %v969, 0.0
    %v1034 = vmax.f32 %v970, 0.0
    %v1035 = vmax.f32 %v971, 0.0
    %v1036 = vmax.f32 %v972, 0.0
    %v1037 = vmax.f32 %v973, 0.0
    %v1038 = vmax.f32 %v974, 0.0
    %v1039 = vmax.f32 %v975, 0.0
    %v1040 = vmax.f32 %v976, 0.0
    %v1041 = vmax.f32 %v977, 0.0
    %v1042 = vmax.f32 %v978, 0.0
    %v1043 = vmax.f32 %v979, 0.0
    %v1044 = vmax.f32 %v980, 0.0
    %v1045 = vmax.f32 %v981, 0.0
    %v1046 = vmax.f32 %v982, 0.0
    %v1047 = vmax.f32 %v983, 0.0
    %v1048 = vmax.f32 %v984, 0.0
    %v1049 = vmax.f32 %v985, 0.0
    %v1050 = vmax.f32 %v986, 0.0
    %v1051 = vmax.f32 %v987, 0.0
    %v1052 = vmax.f32 %v988, 0.0
    %v1053 = vmax.f32 %v989, 0.0
    %v1054 = vmax.f32 %v990, 0.0
    %v1055 = vmax.f32 %v991, 0.0
    %v1056 = vmax.f32 %v992, 0.0
    %v1057 = vpack.c.bf16 %v994, %v993
    %v1058 = vpack.c.bf16 %v996, %v995
    %v1059 = vpack.c.bf16 %v998, %v997
    %v1060 = vpack.c.bf16 %v1000, %v999
    %v1061 = vpack.c.bf16 %v1002, %v1001
    %v1062 = vpack.c.bf16 %v1004, %v1003
    %v1063 = vpack.c.bf16 %v1006, %v1005
    %v1064 = vpack.c.bf16 %v1008, %v1007
    %v1065 = vpack.c.bf16 %v1010, %v1009
    %v1066 = vpack.c.bf16 %v1012, %v1011
    %v1067 = vpack.c.bf16 %v1014, %v1013
    %v1068 = vpack.c.bf16 %v1016, %v1015
    %v1069 = vpack.c.bf16 %v1018, %v1017
    %v1070 = vpack.c.bf16 %v1020, %v1019
    %v1071 = vpack.c.bf16 %v1022, %v1021
    %v1072 = vpack.c.bf16 %v1024, %v1023
    %v1073 = vpack.c.bf16 %v1026, %v1025
    %v1074 = vpack.c.bf16 %v1028, %v1027
    %v1075 = vpack.c.bf16 %v1030, %v1029
    %v1076 = vpack.c.bf16 %v1032, %v1031
    %v1077 = vpack.c.bf16 %v1034, %v1033
    %v1078 = vpack.c.bf16 %v1036, %v1035
    %v1079 = vpack.c.bf16 %v1038, %v1037
    %v1080 = vpack.c.bf16 %v1040, %v1039
    %v1081 = vpack.c.bf16 %v1042, %v1041
    %v1082 = vpack.c.bf16 %v1044, %v1043
    %v1083 = vpack.c.bf16 %v1046, %v1045
    %v1084 = vpack.c.bf16 %v1048, %v1047
    %v1085 = vpack.c.bf16 %v1050, %v1049
    %v1086 = vpack.c.bf16 %v1052, %v1051
    %v1087 = vpack.c.bf16 %v1054, %v1053
    %v1088 = vpack.c.bf16 %v1056, %v1055
    %v1089 = vld [vmem:[%s3] sm:$0xf]
    %v1090 = vld [vmem:[%s3 + $0x4] sm:$0xf]
    %v1091 = vld [vmem:[%s3 + $0x8] sm:$0xf]
    %v1092 = vld [vmem:[%s3 + $0xc] sm:$0xf]
    %v1093 = vld [vmem:[%s3 + $0x10] sm:$0xf]
    %v1094 = vld [vmem:[%s3 + $0x14] sm:$0xf]
    %v1095 = vld [vmem:[%s3 + $0x18] sm:$0xf]
    %v1096 = vld [vmem:[%s3 + $0x1c] sm:$0xf]
    %v1097 = vld [vmem:[%s3 + $0x20] sm:$0xf]
    %v1098 = vld [vmem:[%s3 + $0x24] sm:$0xf]
    %v1099 = vld [vmem:[%s3 + $0x28] sm:$0xf]
    %v1100 = vld [vmem:[%s3 + $0x2c] sm:$0xf]
    %v1101 = vld [vmem:[%s3 + $0x30] sm:$0xf]
    %v1102 = vld [vmem:[%s3 + $0x34] sm:$0xf]
    %v1103 = vld [vmem:[%s3 + $0x38] sm:$0xf]
    %v1104 = vld [vmem:[%s3 + $0x3c] sm:$0xf]
    %v1121 = vunpack.c.l.b16 %v1089
    %v1122 = vunpack.c.l.b16 %v1090
    %v1123 = vunpack.c.l.b16 %v1091
    %v1124 = vunpack.c.l.b16 %v1092
    %v1125 = vunpack.c.l.b16 %v1093
    %v1126 = vunpack.c.l.b16 %v1094
    %v1127 = vunpack.c.l.b16 %v1095
    %v1128 = vunpack.c.l.b16 %v1096
    %v1129 = vunpack.c.l.b16 %v1097
    %v1130 = vunpack.c.l.b16 %v1098
    %v1131 = vunpack.c.l.b16 %v1099
    %v1132 = vunpack.c.l.b16 %v1100
    %v1133 = vunpack.c.l.b16 %v1101
    %v1134 = vunpack.c.l.b16 %v1102
    %v1135 = vunpack.c.l.b16 %v1103
    %v1136 = vunpack.c.l.b16 %v1104
    %v1137 = vpack.c.b16 %v1122, %v1121
    %v1138 = vpack.c.b16 %v1124, %v1123
    %v1139 = vpack.c.b16 %v1126, %v1125
    %v1140 = vpack.c.b16 %v1128, %v1127
    %v1141 = vpack.c.b16 %v1130, %v1129
    %v1142 = vpack.c.b16 %v1132, %v1131
    %v1143 = vpack.c.b16 %v1134, %v1133
    %v1144 = vpack.c.b16 %v1136, %v1135
    %1153 = vmatpush.bf16.msra.mxu0 %v1144
    %1154 = vmatpush.bf16.msra.mxu0 %v1143
    %1155 = vmatpush.bf16.msra.mxu0 %v1142
    %1156 = vmatpush.bf16.msra.mxu0 %v1141
    %1157 = vmatpush.bf16.msra.mxu0 %v1140
    %1158 = vmatpush.bf16.msra.mxu0 %v1139
    %1159 = vmatpush.bf16.msra.mxu0 %v1138
    %1160 = vmatpush.bf16.msra.mxu0 %v1137
    %1161 = vmatmul.bf16.gmra.mxu0 %v1057
    %v1162 = vpop.f32.mrf.mxu0
    %v1163 = vadd.f32 0.0, %v1162
    %v1164 = vpop.f32.mrf.mxu0
    %v1165 = vadd.f32 0.0, %v1164
    %1166 = vmatmul.bf16.gmra.mxu0 %v1058
    %v1167 = vpop.f32.mrf.mxu0
    %v1168 = vadd.f32 0.0, %v1167
    %v1169 = vpop.f32.mrf.mxu0
    %v1170 = vadd.f32 0.0, %v1169
    %1171 = vmatmul.bf16.gmra.mxu0 %v1059
    %v1172 = vpop.f32.mrf.mxu0
    %v1173 = vadd.f32 0.0, %v1172
    %v1174 = vpop.f32.mrf.mxu0
    %v1175 = vadd.f32 0.0, %v1174
    %1176 = vmatmul.bf16.gmra.mxu0 %v1060
    %v1177 = vpop.f32.mrf.mxu0
    %v1178 = vadd.f32 0.0, %v1177
    %v1179 = vpop.f32.mrf.mxu0
    %v1180 = vadd.f32 0.0, %v1179
    %1181 = vmatmul.bf16.gmra.mxu0 %v1061
    %v1182 = vpop.f32.mrf.mxu0
    %v1183 = vadd.f32 0.0, %v1182
    %v1184 = vpop.f32.mrf.mxu0
    %v1185 = vadd.f32 0.0, %v1184
    %1186 = vmatmul.bf16.gmra.mxu0 %v1062
    %v1187 = vpop.f32.mrf.mxu0
    %v1188 = vadd.f32 0.0, %v1187
    %v1189 = vpop.f32.mrf.mxu0
    %v1190 = vadd.f32 0.0, %v1189
    %1191 = vmatmul.bf16.gmra.mxu0 %v1063
    %v1192 = vpop.f32.mrf.mxu0
    %v1193 = vadd.f32 0.0, %v1192
    %v1194 = vpop.f32.mrf.mxu0
    %v1195 = vadd.f32 0.0, %v1194
    %1196 = vmatmul.bf16.gmra.mxu0 %v1064
    %v1197 = vpop.f32.mrf.mxu0
    %v1198 = vadd.f32 0.0, %v1197
    %v1199 = vpop.f32.mrf.mxu0
    %v1200 = vadd.f32 0.0, %v1199
    %1201 = vmatmul.bf16.gmra.mxu0 %v1065
    %v1202 = vpop.f32.mrf.mxu0
    %v1203 = vadd.f32 0.0, %v1202
    %v1204 = vpop.f32.mrf.mxu0
    %v1205 = vadd.f32 0.0, %v1204
    %1206 = vmatmul.bf16.gmra.mxu0 %v1066
    %v1207 = vpop.f32.mrf.mxu0
    %v1208 = vadd.f32 0.0, %v1207
    %v1209 = vpop.f32.mrf.mxu0
    %v1210 = vadd.f32 0.0, %v1209
    %1211 = vmatmul.bf16.gmra.mxu0 %v1067
    %v1212 = vpop.f32.mrf.mxu0
    %v1213 = vadd.f32 0.0, %v1212
    %v1214 = vpop.f32.mrf.mxu0
    %v1215 = vadd.f32 0.0, %v1214
    %1216 = vmatmul.bf16.gmra.mxu0 %v1068
    %v1217 = vpop.f32.mrf.mxu0
    %v1218 = vadd.f32 0.0, %v1217
    %v1219 = vpop.f32.mrf.mxu0
    %v1220 = vadd.f32 0.0, %v1219
    %1221 = vmatmul.bf16.gmra.mxu0 %v1069
    %v1222 = vpop.f32.mrf.mxu0
    %v1223 = vadd.f32 0.0, %v1222
    %v1224 = vpop.f32.mrf.mxu0
    %v1225 = vadd.f32 0.0, %v1224
    %1226 = vmatmul.bf16.gmra.mxu0 %v1070
    %v1227 = vpop.f32.mrf.mxu0
    %v1228 = vadd.f32 0.0, %v1227
    %v1229 = vpop.f32.mrf.mxu0
    %v1230 = vadd.f32 0.0, %v1229
    %1231 = vmatmul.bf16.gmra.mxu0 %v1071
    %v1232 = vpop.f32.mrf.mxu0
    %v1233 = vadd.f32 0.0, %v1232
    %v1234 = vpop.f32.mrf.mxu0
    %v1235 = vadd.f32 0.0, %v1234
    %1236 = vmatmul.bf16.gmra.mxu0 %v1072
    %v1237 = vpop.f32.mrf.mxu0
    %v1238 = vadd.f32 0.0, %v1237
    %v1239 = vpop.f32.mrf.mxu0
    %v1240 = vadd.f32 0.0, %v1239
    %1241 = vmatmul.bf16.gmra.mxu0 %v1073
    %v1242 = vpop.f32.mrf.mxu0
    %v1243 = vadd.f32 0.0, %v1242
    %v1244 = vpop.f32.mrf.mxu0
    %v1245 = vadd.f32 0.0, %v1244
    %1246 = vmatmul.bf16.gmra.mxu0 %v1074
    %v1247 = vpop.f32.mrf.mxu0
    %v1248 = vadd.f32 0.0, %v1247
    %v1249 = vpop.f32.mrf.mxu0
    %v1250 = vadd.f32 0.0, %v1249
    %1251 = vmatmul.bf16.gmra.mxu0 %v1075
    %v1252 = vpop.f32.mrf.mxu0
    %v1253 = vadd.f32 0.0, %v1252
    %v1254 = vpop.f32.mrf.mxu0
    %v1255 = vadd.f32 0.0, %v1254
    %1256 = vmatmul.bf16.gmra.mxu0 %v1076
    %v1257 = vpop.f32.mrf.mxu0
    %v1258 = vadd.f32 0.0, %v1257
    %v1259 = vpop.f32.mrf.mxu0
    %v1260 = vadd.f32 0.0, %v1259
    %1261 = vmatmul.bf16.gmra.mxu0 %v1077
    %v1262 = vpop.f32.mrf.mxu0
    %v1263 = vadd.f32 0.0, %v1262
    %v1264 = vpop.f32.mrf.mxu0
    %v1265 = vadd.f32 0.0, %v1264
    %1266 = vmatmul.bf16.gmra.mxu0 %v1078
    %v1267 = vpop.f32.mrf.mxu0
    %v1268 = vadd.f32 0.0, %v1267
    %v1269 = vpop.f32.mrf.mxu0
    %v1270 = vadd.f32 0.0, %v1269
    %1271 = vmatmul.bf16.gmra.mxu0 %v1079
    %v1272 = vpop.f32.mrf.mxu0
    %v1273 = vadd.f32 0.0, %v1272
    %v1274 = vpop.f32.mrf.mxu0
    %v1275 = vadd.f32 0.0, %v1274
    %1276 = vmatmul.bf16.gmra.mxu0 %v1080
    %v1277 = vpop.f32.mrf.mxu0
    %v1278 = vadd.f32 0.0, %v1277
    %v1279 = vpop.f32.mrf.mxu0
    %v1280 = vadd.f32 0.0, %v1279
    %1281 = vmatmul.bf16.gmra.mxu0 %v1081
    %v1282 = vpop.f32.mrf.mxu0
    %v1283 = vadd.f32 0.0, %v1282
    %v1284 = vpop.f32.mrf.mxu0
    %v1285 = vadd.f32 0.0, %v1284
    %1286 = vmatmul.bf16.gmra.mxu0 %v1082
    %v1287 = vpop.f32.mrf.mxu0
    %v1288 = vadd.f32 0.0, %v1287
    %v1289 = vpop.f32.mrf.mxu0
    %v1290 = vadd.f32 0.0, %v1289
    %1291 = vmatmul.bf16.gmra.mxu0 %v1083
    %v1292 = vpop.f32.mrf.mxu0
    %v1293 = vadd.f32 0.0, %v1292
    %v1294 = vpop.f32.mrf.mxu0
    %v1295 = vadd.f32 0.0, %v1294
    %1296 = vmatmul.bf16.gmra.mxu0 %v1084
    %v1297 = vpop.f32.mrf.mxu0
    %v1298 = vadd.f32 0.0, %v1297
    %v1299 = vpop.f32.mrf.mxu0
    %v1300 = vadd.f32 0.0, %v1299
    %1301 = vmatmul.bf16.gmra.mxu0 %v1085
    %v1302 = vpop.f32.mrf.mxu0
    %v1303 = vadd.f32 0.0, %v1302
    %v1304 = vpop.f32.mrf.mxu0
    %v1305 = vadd.f32 0.0, %v1304
    %1306 = vmatmul.bf16.gmra.mxu0 %v1086
    %v1307 = vpop.f32.mrf.mxu0
    %v1308 = vadd.f32 0.0, %v1307
    %v1309 = vpop.f32.mrf.mxu0
    %v1310 = vadd.f32 0.0, %v1309
    %1311 = vmatmul.bf16.gmra.mxu0 %v1087
    %v1312 = vpop.f32.mrf.mxu0
    %v1313 = vadd.f32 0.0, %v1312
    %v1314 = vpop.f32.mrf.mxu0
    %v1315 = vadd.f32 0.0, %v1314
    %1316 = vmatmul.bf16.gmra.mxu0 %v1088
    %v1317 = vpop.f32.mrf.mxu0
    %v1318 = vadd.f32 0.0, %v1317
    %v1319 = vpop.f32.mrf.mxu0
    %v1320 = vadd.f32 0.0, %v1319
    %1321 = vdwg.mxu0
    %v1322 = vmax.f32 %v1163, %v1183
    %v1323 = vmax.f32 %v1322, %v1203
    %v1324 = vmax.f32 %v1323, %v1223
    %v1325 = vmax.f32 %v1324, %v1243
    %v1326 = vmax.f32 %v1325, %v1263
    %v1327 = vmax.f32 %v1326, %v1283
    %v1328 = vmax.f32 %v1327, %v1303
    %v1329 = vmax.f32 %v1165, %v1185
    %v1330 = vmax.f32 %v1329, %v1205
    %v1331 = vmax.f32 %v1330, %v1225
    %v1332 = vmax.f32 %v1331, %v1245
    %v1333 = vmax.f32 %v1332, %v1265
    %v1334 = vmax.f32 %v1333, %v1285
    %v1335 = vmax.f32 %v1334, %v1305
    %v1336 = vmax.f32 %v1168, %v1188
    %v1337 = vmax.f32 %v1336, %v1208
    %v1338 = vmax.f32 %v1337, %v1228
    %v1339 = vmax.f32 %v1338, %v1248
    %v1340 = vmax.f32 %v1339, %v1268
    %v1341 = vmax.f32 %v1340, %v1288
    %v1342 = vmax.f32 %v1341, %v1308
    %v1343 = vmax.f32 %v1170, %v1190
    %v1344 = vmax.f32 %v1343, %v1210
    %v1345 = vmax.f32 %v1344, %v1230
    %v1346 = vmax.f32 %v1345, %v1250
    %v1347 = vmax.f32 %v1346, %v1270
    %v1348 = vmax.f32 %v1347, %v1290
    %v1349 = vmax.f32 %v1348, %v1310
    %v1350 = vmax.f32 %v1173, %v1193
    %v1351 = vmax.f32 %v1350, %v1213
    %v1352 = vmax.f32 %v1351, %v1233
    %v1353 = vmax.f32 %v1352, %v1253
    %v1354 = vmax.f32 %v1353, %v1273
    %v1355 = vmax.f32 %v1354, %v1293
    %v1356 = vmax.f32 %v1355, %v1313
    %v1357 = vmax.f32 %v1175, %v1195
    %v1358 = vmax.f32 %v1357, %v1215
    %v1359 = vmax.f32 %v1358, %v1235
    %v1360 = vmax.f32 %v1359, %v1255
    %v1361 = vmax.f32 %v1360, %v1275
    %v1362 = vmax.f32 %v1361, %v1295
    %v1363 = vmax.f32 %v1362, %v1315
    %v1364 = vmax.f32 %v1178, %v1198
    %v1365 = vmax.f32 %v1364, %v1218
    %v1366 = vmax.f32 %v1365, %v1238
    %v1367 = vmax.f32 %v1366, %v1258
    %v1368 = vmax.f32 %v1367, %v1278
    %v1369 = vmax.f32 %v1368, %v1298
    %v1370 = vmax.f32 %v1369, %v1318
    %v1371 = vmax.f32 %v1180, %v1200
    %v1372 = vmax.f32 %v1371, %v1220
    %v1373 = vmax.f32 %v1372, %v1240
    %v1374 = vmax.f32 %v1373, %v1260
    %v1375 = vmax.f32 %v1374, %v1280
    %v1376 = vmax.f32 %v1375, %v1300
    %v1377 = vmax.f32 %v1376, %v1320
    %v1378 = vsub.f32 %v1163, %v1328
    %v1379 = vsub.f32 %v1165, %v1335
    %v1380 = vsub.f32 %v1168, %v1342
    %v1381 = vsub.f32 %v1170, %v1349
    %v1382 = vsub.f32 %v1173, %v1356
    %v1383 = vsub.f32 %v1175, %v1363
    %v1384 = vsub.f32 %v1178, %v1370
    %v1385 = vsub.f32 %v1180, %v1377
    %v1386 = vsub.f32 %v1183, %v1328
    %v1387 = vsub.f32 %v1185, %v1335
    %v1388 = vsub.f32 %v1188, %v1342
    %v1389 = vsub.f32 %v1190, %v1349
    %v1390 = vsub.f32 %v1193, %v1356
    %v1391 = vsub.f32 %v1195, %v1363
    %v1392 = vsub.f32 %v1198, %v1370
    %v1393 = vsub.f32 %v1200, %v1377
    %v1394 = vsub.f32 %v1203, %v1328
    %v1395 = vsub.f32 %v1205, %v1335
    %v1396 = vsub.f32 %v1208, %v1342
    %v1397 = vsub.f32 %v1210, %v1349
    %v1398 = vsub.f32 %v1213, %v1356
    %v1399 = vsub.f32 %v1215, %v1363
    %v1400 = vsub.f32 %v1218, %v1370
    %v1401 = vsub.f32 %v1220, %v1377
    %v1402 = vsub.f32 %v1223, %v1328
    %v1403 = vsub.f32 %v1225, %v1335
    %v1404 = vsub.f32 %v1228, %v1342
    %v1405 = vsub.f32 %v1230, %v1349
    %v1406 = vsub.f32 %v1233, %v1356
    %v1407 = vsub.f32 %v1235, %v1363
    %v1408 = vsub.f32 %v1238, %v1370
    %v1409 = vsub.f32 %v1240, %v1377
    %v1410 = vsub.f32 %v1243, %v1328
    %v1411 = vsub.f32 %v1245, %v1335
    %v1412 = vsub.f32 %v1248, %v1342
    %v1413 = vsub.f32 %v1250, %v1349
    %v1414 = vsub.f32 %v1253, %v1356
    %v1415 = vsub.f32 %v1255, %v1363
    %v1416 = vsub.f32 %v1258, %v1370
    %v1417 = vsub.f32 %v1260, %v1377
    %v1418 = vsub.f32 %v1263, %v1328
    %v1419 = vsub.f32 %v1265, %v1335
    %v1420 = vsub.f32 %v1268, %v1342
    %v1421 = vsub.f32 %v1270, %v1349
    %v1422 = vsub.f32 %v1273, %v1356
    %v1423 = vsub.f32 %v1275, %v1363
    %v1424 = vsub.f32 %v1278, %v1370
    %v1425 = vsub.f32 %v1280, %v1377
    %v1426 = vsub.f32 %v1283, %v1328
    %v1427 = vsub.f32 %v1285, %v1335
    %v1428 = vsub.f32 %v1288, %v1342
    %v1429 = vsub.f32 %v1290, %v1349
    %v1430 = vsub.f32 %v1293, %v1356
    %v1431 = vsub.f32 %v1295, %v1363
    %v1432 = vsub.f32 %v1298, %v1370
    %v1433 = vsub.f32 %v1300, %v1377
    %v1434 = vsub.f32 %v1303, %v1328
    %v1435 = vsub.f32 %v1305, %v1335
    %v1436 = vsub.f32 %v1308, %v1342
    %v1437 = vsub.f32 %v1310, %v1349
    %v1438 = vsub.f32 %v1313, %v1356
    %v1439 = vsub.f32 %v1315, %v1363
    %v1440 = vsub.f32 %v1318, %v1370
    %v1441 = vsub.f32 %v1320, %v1377
    %v1442 = vmul.f32 %v1378, 1.442695
    %v1443 = vpow.pop %v1442
    %v1444 = vmul.f32 %v1379, 1.442695
    %v1445 = vpow.pop %v1444
    %v1446 = vmul.f32 %v1380, 1.442695
    %v1447 = vpow.pop %v1446
    %v1448 = vmul.f32 %v1381, 1.442695
    %v1449 = vpow.pop %v1448
    %v1450 = vmul.f32 %v1382, 1.442695
    %v1451 = vpow.pop %v1450
    %v1452 = vmul.f32 %v1383, 1.442695
    %v1453 = vpow.pop %v1452
    %v1454 = vmul.f32 %v1384, 1.442695
    %v1455 = vpow.pop %v1454
    %v1456 = vmul.f32 %v1385, 1.442695
    %v1457 = vpow.pop %v1456
    %v1458 = vmul.f32 %v1386, 1.442695
    %v1459 = vpow.pop %v1458
    %v1460 = vmul.f32 %v1387, 1.442695
    %v1461 = vpow.pop %v1460
    %v1462 = vmul.f32 %v1388, 1.442695
    %v1463 = vpow.pop %v1462
    %v1464 = vmul.f32 %v1389, 1.442695
    %v1465 = vpow.pop %v1464
    %v1466 = vmul.f32 %v1390, 1.442695
    %v1467 = vpow.pop %v1466
    %v1468 = vmul.f32 %v1391, 1.442695
    %v1469 = vpow.pop %v1468
    %v1470 = vmul.f32 %v1392, 1.442695
    %v1471 = vpow.pop %v1470
    %v1472 = vmul.f32 %v1393, 1.442695
    %v1473 = vpow.pop %v1472
    %v1474 = vmul.f32 %v1394, 1.442695
    %v1475 = vpow.pop %v1474
    %v1476 = vmul.f32 %v1395, 1.442695
    %v1477 = vpow.pop %v1476
    %v1478 = vmul.f32 %v1396, 1.442695
    %v1479 = vpow.pop %v1478
    %v1480 = vmul.f32 %v1397, 1.442695
    %v1481 = vpow.pop %v1480
    %v1482 = vmul.f32 %v1398, 1.442695
    %v1483 = vpow.pop %v1482
    %v1484 = vmul.f32 %v1399, 1.442695
    %v1485 = vpow.pop %v1484
    %v1486 = vmul.f32 %v1400, 1.442695
    %v1487 = vpow.pop %v1486
    %v1488 = vmul.f32 %v1401, 1.442695
    %v1489 = vpow.pop %v1488
    %v1490 = vmul.f32 %v1402, 1.442695
    %v1491 = vpow.pop %v1490
    %v1492 = vmul.f32 %v1403, 1.442695
    %v1493 = vpow.pop %v1492
    %v1494 = vmul.f32 %v1404, 1.442695
    %v1495 = vpow.pop %v1494
    %v1496 = vmul.f32 %v1405, 1.442695
    %v1497 = vpow.pop %v1496
    %v1498 = vmul.f32 %v1406, 1.442695
    %v1499 = vpow.pop %v1498
    %v1500 = vmul.f32 %v1407, 1.442695
    %v1501 = vpow.pop %v1500
    %v1502 = vmul.f32 %v1408, 1.442695
    %v1503 = vpow.pop %v1502
    %v1504 = vmul.f32 %v1409, 1.442695
    %v1505 = vpow.pop %v1504
    %v1506 = vmul.f32 %v1410, 1.442695
    %v1507 = vpow.pop %v1506
    %v1508 = vmul.f32 %v1411, 1.442695
    %v1509 = vpow.pop %v1508
    %v1510 = vmul.f32 %v1412, 1.442695
    %v1511 = vpow.pop %v1510
    %v1512 = vmul.f32 %v1413, 1.442695
    %v1513 = vpow.pop %v1512
    %v1514 = vmul.f32 %v1414, 1.442695
    %v1515 = vpow.pop %v1514
    %v1516 = vmul.f32 %v1415, 1.442695
    %v1517 = vpow.pop %v1516
    %v1518 = vmul.f32 %v1416, 1.442695
    %v1519 = vpow.pop %v1518
    %v1520 = vmul.f32 %v1417, 1.442695
    %v1521 = vpow.pop %v1520
    %v1522 = vmul.f32 %v1418, 1.442695
    %v1523 = vpow.pop %v1522
    %v1524 = vmul.f32 %v1419, 1.442695
    %v1525 = vpow.pop %v1524
    %v1526 = vmul.f32 %v1420, 1.442695
    %v1527 = vpow.pop %v1526
    %v1528 = vmul.f32 %v1421, 1.442695
    %v1529 = vpow.pop %v1528
    %v1530 = vmul.f32 %v1422, 1.442695
    %v1531 = vpow.pop %v1530
    %v1532 = vmul.f32 %v1423, 1.442695
    %v1533 = vpow.pop %v1532
    %v1534 = vmul.f32 %v1424, 1.442695
    %v1535 = vpow.pop %v1534
    %v1536 = vmul.f32 %v1425, 1.442695
    %v1537 = vpow.pop %v1536
    %v1538 = vmul.f32 %v1426, 1.442695
    %v1539 = vpow.pop %v1538
    %v1540 = vmul.f32 %v1427, 1.442695
    %v1541 = vpow.pop %v1540
    %v1542 = vmul.f32 %v1428, 1.442695
    %v1543 = vpow.pop %v1542
    %v1544 = vmul.f32 %v1429, 1.442695
    %v1545 = vpow.pop %v1544
    %v1546 = vmul.f32 %v1430, 1.442695
    %v1547 = vpow.pop %v1546
    %v1548 = vmul.f32 %v1431, 1.442695
    %v1549 = vpow.pop %v1548
    %v1550 = vmul.f32 %v1432, 1.442695
    %v1551 = vpow.pop %v1550
    %v1552 = vmul.f32 %v1433, 1.442695
    %v1553 = vpow.pop %v1552
    %v1554 = vmul.f32 %v1434, 1.442695
    %v1555 = vpow.pop %v1554
    %v1556 = vmul.f32 %v1435, 1.442695
    %v1557 = vpow.pop %v1556
    %v1558 = vmul.f32 %v1436, 1.442695
    %v1559 = vpow.pop %v1558
    %v1560 = vmul.f32 %v1437, 1.442695
    %v1561 = vpow.pop %v1560
    %v1562 = vmul.f32 %v1438, 1.442695
    %v1563 = vpow.pop %v1562
    %v1564 = vmul.f32 %v1439, 1.442695
    %v1565 = vpow.pop %v1564
    %v1566 = vmul.f32 %v1440, 1.442695
    %v1567 = vpow.pop %v1566
    %v1568 = vmul.f32 %v1441, 1.442695
    %v1569 = vpow.pop %v1568
    %v1570 = vadd.f32 %v1443, %v1459
    %v1571 = vadd.f32 %v1570, %v1475
    %v1572 = vadd.f32 %v1571, %v1491
    %v1573 = vadd.f32 %v1572, %v1507
    %v1574 = vadd.f32 %v1573, %v1523
    %v1575 = vadd.f32 %v1574, %v1539
    %v1576 = vadd.f32 %v1575, %v1555
    %v1577 = vadd.f32 %v1445, %v1461
    %v1578 = vadd.f32 %v1577, %v1477
    %v1579 = vadd.f32 %v1578, %v1493
    %v1580 = vadd.f32 %v1579, %v1509
    %v1581 = vadd.f32 %v1580, %v1525
    %v1582 = vadd.f32 %v1581, %v1541
    %v1583 = vadd.f32 %v1582, %v1557
    %v1584 = vadd.f32 %v1447, %v1463
    %v1585 = vadd.f32 %v1584, %v1479
    %v1586 = vadd.f32 %v1585, %v1495
    %v1587 = vadd.f32 %v1586, %v1511
    %v1588 = vadd.f32 %v1587, %v1527
    %v1589 = vadd.f32 %v1588, %v1543
    %v1590 = vadd.f32 %v1589, %v1559
    %v1591 = vadd.f32 %v1449, %v1465
    %v1592 = vadd.f32 %v1591, %v1481
    %v1593 = vadd.f32 %v1592, %v1497
    %v1594 = vadd.f32 %v1593, %v1513
    %v1595 = vadd.f32 %v1594, %v1529
    %v1596 = vadd.f32 %v1595, %v1545
    %v1597 = vadd.f32 %v1596, %v1561
    %v1598 = vadd.f32 %v1451, %v1467
    %v1599 = vadd.f32 %v1598, %v1483
    %v1600 = vadd.f32 %v1599, %v1499
    %v1601 = vadd.f32 %v1600, %v1515
    %v1602 = vadd.f32 %v1601, %v1531
    %v1603 = vadd.f32 %v1602, %v1547
    %v1604 = vadd.f32 %v1603, %v1563
    %v1605 = vadd.f32 %v1453, %v1469
    %v1606 = vadd.f32 %v1605, %v1485
    %v1607 = vadd.f32 %v1606, %v1501
    %v1608 = vadd.f32 %v1607, %v1517
    %v1609 = vadd.f32 %v1608, %v1533
    %v1610 = vadd.f32 %v1609, %v1549
    %v1611 = vadd.f32 %v1610, %v1565
    %v1612 = vadd.f32 %v1455, %v1471
    %v1613 = vadd.f32 %v1612, %v1487
    %v1614 = vadd.f32 %v1613, %v1503
    %v1615 = vadd.f32 %v1614, %v1519
    %v1616 = vadd.f32 %v1615, %v1535
    %v1617 = vadd.f32 %v1616, %v1551
    %v1618 = vadd.f32 %v1617, %v1567
    %v1619 = vadd.f32 %v1457, %v1473
    %v1620 = vadd.f32 %v1619, %v1489
    %v1621 = vadd.f32 %v1620, %v1505
    %v1622 = vadd.f32 %v1621, %v1521
    %v1623 = vadd.f32 %v1622, %v1537
    %v1624 = vadd.f32 %v1623, %v1553
    %v1625 = vadd.f32 %v1624, %v1569
    %v1626 = vrcp.pop %v1576
    %v1627 = vrcp.pop %v1583
    %v1628 = vrcp.pop %v1590
    %v1629 = vrcp.pop %v1597
    %v1630 = vrcp.pop %v1604
    %v1631 = vrcp.pop %v1611
    %v1632 = vrcp.pop %v1618
    %v1633 = vrcp.pop %v1625
    %v1634 = vmul.f32 %v1443, %v1626
    %v1635 = vmul.f32 %v1445, %v1627
    %v1636 = vmul.f32 %v1447, %v1628
    %v1637 = vmul.f32 %v1449, %v1629
    %v1638 = vmul.f32 %v1451, %v1630
    %v1639 = vmul.f32 %v1453, %v1631
    %v1640 = vmul.f32 %v1455, %v1632
    %v1641 = vmul.f32 %v1457, %v1633
    %v1642 = vmul.f32 %v1459, %v1626
    %v1643 = vmul.f32 %v1461, %v1627
    %v1644 = vmul.f32 %v1463, %v1628
    %v1645 = vmul.f32 %v1465, %v1629
    %v1646 = vmul.f32 %v1467, %v1630
    %v1647 = vmul.f32 %v1469, %v1631
    %v1648 = vmul.f32 %v1471, %v1632
    %v1649 = vmul.f32 %v1473, %v1633
    %v1650 = vmul.f32 %v1475, %v1626
    %v1651 = vmul.f32 %v1477, %v1627
    %v1652 = vmul.f32 %v1479, %v1628
    %v1653 = vmul.f32 %v1481, %v1629
    %v1654 = vmul.f32 %v1483, %v1630
    %v1655 = vmul.f32 %v1485, %v1631
    %v1656 = vmul.f32 %v1487, %v1632
    %v1657 = vmul.f32 %v1489, %v1633
    %v1658 = vmul.f32 %v1491, %v1626
    %v1659 = vmul.f32 %v1493, %v1627
    %v1660 = vmul.f32 %v1495, %v1628
    %v1661 = vmul.f32 %v1497, %v1629
    %v1662 = vmul.f32 %v1499, %v1630
    %v1663 = vmul.f32 %v1501, %v1631
    %v1664 = vmul.f32 %v1503, %v1632
    %v1665 = vmul.f32 %v1505, %v1633
    %v1666 = vmul.f32 %v1507, %v1626
    %v1667 = vmul.f32 %v1509, %v1627
    %v1668 = vmul.f32 %v1511, %v1628
    %v1669 = vmul.f32 %v1513, %v1629
    %v1670 = vmul.f32 %v1515, %v1630
    %v1671 = vmul.f32 %v1517, %v1631
    %v1672 = vmul.f32 %v1519, %v1632
    %v1673 = vmul.f32 %v1521, %v1633
    %v1674 = vmul.f32 %v1523, %v1626
    %v1675 = vmul.f32 %v1525, %v1627
    %v1676 = vmul.f32 %v1527, %v1628
    %v1677 = vmul.f32 %v1529, %v1629
    %v1678 = vmul.f32 %v1531, %v1630
    %v1679 = vmul.f32 %v1533, %v1631
    %v1680 = vmul.f32 %v1535, %v1632
    %v1681 = vmul.f32 %v1537, %v1633
    %v1682 = vmul.f32 %v1539, %v1626
    %v1683 = vmul.f32 %v1541, %v1627
    %v1684 = vmul.f32 %v1543, %v1628
    %v1685 = vmul.f32 %v1545, %v1629
    %v1686 = vmul.f32 %v1547, %v1630
    %v1687 = vmul.f32 %v1549, %v1631
    %v1688 = vmul.f32 %v1551, %v1632
    %v1689 = vmul.f32 %v1553, %v1633
    %v1690 = vmul.f32 %v1555, %v1626
    %v1691 = vmul.f32 %v1557, %v1627
    %v1692 = vmul.f32 %v1559, %v1628
    %v1693 = vmul.f32 %v1561, %v1629
    %v1694 = vmul.f32 %v1563, %v1630
    %v1695 = vmul.f32 %v1565, %v1631
    %v1696 = vmul.f32 %v1567, %v1632
    %v1697 = vmul.f32 %v1569, %v1633
    %1699 = vset.pattern.permute.xlu0 0
    %1700 = vperm.xlu0 %1699, %v1634
    %v1701 = vpop.permute.xlu0 %1700
    %1704 = vset.pattern.permute.xlu0 0
    %1705 = vperm.xlu0 %1704, %v1635
    %v1706 = vpop.permute.xlu0 %1705
    %1709 = vset.pattern.permute.xlu0 0
    %1710 = vperm.xlu0 %1709, %v1636
    %v1711 = vpop.permute.xlu0 %1710
    %1714 = vset.pattern.permute.xlu0 0
    %1715 = vperm.xlu0 %1714, %v1637
    %v1716 = vpop.permute.xlu0 %1715
    %1719 = vset.pattern.permute.xlu0 0
    %1720 = vperm.xlu0 %1719, %v1638
    %v1721 = vpop.permute.xlu0 %1720
    %1724 = vset.pattern.permute.xlu0 0
    %1725 = vperm.xlu0 %1724, %v1639
    %v1726 = vpop.permute.xlu0 %1725
    %1729 = vset.pattern.permute.xlu0 0
    %1730 = vperm.xlu0 %1729, %v1640
    %v1731 = vpop.permute.xlu0 %1730
    %1734 = vset.pattern.permute.xlu0 0
    %1735 = vperm.xlu0 %1734, %v1641
    %v1736 = vpop.permute.xlu0 %1735
    %1739 = vset.pattern.permute.xlu0 0
    %1740 = vperm.xlu0 %1739, %v1642
    %v1741 = vpop.permute.xlu0 %1740
    %1744 = vset.pattern.permute.xlu0 0
    %1745 = vperm.xlu0 %1744, %v1643
    %v1746 = vpop.permute.xlu0 %1745
    %1749 = vset.pattern.permute.xlu0 0
    %1750 = vperm.xlu0 %1749, %v1644
    %v1751 = vpop.permute.xlu0 %1750
    %1754 = vset.pattern.permute.xlu0 0
    %1755 = vperm.xlu0 %1754, %v1645
    %v1756 = vpop.permute.xlu0 %1755
    %1759 = vset.pattern.permute.xlu0 0
    %1760 = vperm.xlu0 %1759, %v1646
    %v1761 = vpop.permute.xlu0 %1760
    %1764 = vset.pattern.permute.xlu0 0
    %1765 = vperm.xlu0 %1764, %v1647
    %v1766 = vpop.permute.xlu0 %1765
    %1769 = vset.pattern.permute.xlu0 0
    %1770 = vperm.xlu0 %1769, %v1648
    %v1771 = vpop.permute.xlu0 %1770
    %1774 = vset.pattern.permute.xlu0 0
    %1775 = vperm.xlu0 %1774, %v1649
    %v1776 = vpop.permute.xlu0 %1775
    %1779 = vset.pattern.permute.xlu0 0
    %1780 = vperm.xlu0 %1779, %v1650
    %v1781 = vpop.permute.xlu0 %1780
    %1784 = vset.pattern.permute.xlu0 0
    %1785 = vperm.xlu0 %1784, %v1651
    %v1786 = vpop.permute.xlu0 %1785
    %1789 = vset.pattern.permute.xlu0 0
    %1790 = vperm.xlu0 %1789, %v1652
    %v1791 = vpop.permute.xlu0 %1790
    %1794 = vset.pattern.permute.xlu0 0
    %1795 = vperm.xlu0 %1794, %v1653
    %v1796 = vpop.permute.xlu0 %1795
    %1799 = vset.pattern.permute.xlu0 0
    %1800 = vperm.xlu0 %1799, %v1654
    %v1801 = vpop.permute.xlu0 %1800
    %1804 = vset.pattern.permute.xlu0 0
    %1805 = vperm.xlu0 %1804, %v1655
    %v1806 = vpop.permute.xlu0 %1805
    %1809 = vset.pattern.permute.xlu0 0
    %1810 = vperm.xlu0 %1809, %v1656
    %v1811 = vpop.permute.xlu0 %1810
    %1814 = vset.pattern.permute.xlu0 0
    %1815 = vperm.xlu0 %1814, %v1657
    %v1816 = vpop.permute.xlu0 %1815
    %1819 = vset.pattern.permute.xlu0 0
    %1820 = vperm.xlu0 %1819, %v1658
    %v1821 = vpop.permute.xlu0 %1820
    %1824 = vset.pattern.permute.xlu0 0
    %1825 = vperm.xlu0 %1824, %v1659
    %v1826 = vpop.permute.xlu0 %1825
    %1829 = vset.pattern.permute.xlu0 0
    %1830 = vperm.xlu0 %1829, %v1660
    %v1831 = vpop.permute.xlu0 %1830
    %1834 = vset.pattern.permute.xlu0 0
    %1835 = vperm.xlu0 %1834, %v1661
    %v1836 = vpop.permute.xlu0 %1835
    %1839 = vset.pattern.permute.xlu0 0
    %1840 = vperm.xlu0 %1839, %v1662
    %v1841 = vpop.permute.xlu0 %1840
    %1844 = vset.pattern.permute.xlu0 0
    %1845 = vperm.xlu0 %1844, %v1663
    %v1846 = vpop.permute.xlu0 %1845
    %1849 = vset.pattern.permute.xlu0 0
    %1850 = vperm.xlu0 %1849, %v1664
    %v1851 = vpop.permute.xlu0 %1850
    %1854 = vset.pattern.permute.xlu0 0
    %1855 = vperm.xlu0 %1854, %v1665
    %v1856 = vpop.permute.xlu0 %1855
    %1859 = vset.pattern.permute.xlu0 0
    %1860 = vperm.xlu0 %1859, %v1666
    %v1861 = vpop.permute.xlu0 %1860
    %1864 = vset.pattern.permute.xlu0 0
    %1865 = vperm.xlu0 %1864, %v1667
    %v1866 = vpop.permute.xlu0 %1865
    %1869 = vset.pattern.permute.xlu0 0
    %1870 = vperm.xlu0 %1869, %v1668
    %v1871 = vpop.permute.xlu0 %1870
    %1874 = vset.pattern.permute.xlu0 0
    %1875 = vperm.xlu0 %1874, %v1669
    %v1876 = vpop.permute.xlu0 %1875
    %1879 = vset.pattern.permute.xlu0 0
    %1880 = vperm.xlu0 %1879, %v1670
    %v1881 = vpop.permute.xlu0 %1880
    %1884 = vset.pattern.permute.xlu0 0
    %1885 = vperm.xlu0 %1884, %v1671
    %v1886 = vpop.permute.xlu0 %1885
    %1889 = vset.pattern.permute.xlu0 0
    %1890 = vperm.xlu0 %1889, %v1672
    %v1891 = vpop.permute.xlu0 %1890
    %1894 = vset.pattern.permute.xlu0 0
    %1895 = vperm.xlu0 %1894, %v1673
    %v1896 = vpop.permute.xlu0 %1895
    %1899 = vset.pattern.permute.xlu0 0
    %1900 = vperm.xlu0 %1899, %v1674
    %v1901 = vpop.permute.xlu0 %1900
    %1904 = vset.pattern.permute.xlu0 0
    %1905 = vperm.xlu0 %1904, %v1675
    %v1906 = vpop.permute.xlu0 %1905
    %1909 = vset.pattern.permute.xlu0 0
    %1910 = vperm.xlu0 %1909, %v1676
    %v1911 = vpop.permute.xlu0 %1910
    %1914 = vset.pattern.permute.xlu0 0
    %1915 = vperm.xlu0 %1914, %v1677
    %v1916 = vpop.permute.xlu0 %1915
    %1919 = vset.pattern.permute.xlu0 0
    %1920 = vperm.xlu0 %1919, %v1678
    %v1921 = vpop.permute.xlu0 %1920
    %1924 = vset.pattern.permute.xlu0 0
    %1925 = vperm.xlu0 %1924, %v1679
    %v1926 = vpop.permute.xlu0 %1925
    %1929 = vset.pattern.permute.xlu0 0
    %1930 = vperm.xlu0 %1929, %v1680
    %v1931 = vpop.permute.xlu0 %1930
    %1934 = vset.pattern.permute.xlu0 0
    %1935 = vperm.xlu0 %1934, %v1681
    %v1936 = vpop.permute.xlu0 %1935
    %1939 = vset.pattern.permute.xlu0 0
    %1940 = vperm.xlu0 %1939, %v1682
    %v1941 = vpop.permute.xlu0 %1940
    %1944 = vset.pattern.permute.xlu0 0
    %1945 = vperm.xlu0 %1944, %v1683
    %v1946 = vpop.permute.xlu0 %1945
    %1949 = vset.pattern.permute.xlu0 0
    %1950 = vperm.xlu0 %1949, %v1684
    %v1951 = vpop.permute.xlu0 %1950
    %1954 = vset.pattern.permute.xlu0 0
    %1955 = vperm.xlu0 %1954, %v1685
    %v1956 = vpop.permute.xlu0 %1955
    %1959 = vset.pattern.permute.xlu0 0
    %1960 = vperm.xlu0 %1959, %v1686
    %v1961 = vpop.permute.xlu0 %1960
    %1964 = vset.pattern.permute.xlu0 0
    %1965 = vperm.xlu0 %1964, %v1687
    %v1966 = vpop.permute.xlu0 %1965
    %1969 = vset.pattern.permute.xlu0 0
    %1970 = vperm.xlu0 %1969, %v1688
    %v1971 = vpop.permute.xlu0 %1970
    %1974 = vset.pattern.permute.xlu0 0
    %1975 = vperm.xlu0 %1974, %v1689
    %v1976 = vpop.permute.xlu0 %1975
    %1979 = vset.pattern.permute.xlu0 0
    %1980 = vperm.xlu0 %1979, %v1690
    %v1981 = vpop.permute.xlu0 %1980
    %1984 = vset.pattern.permute.xlu0 0
    %1985 = vperm.xlu0 %1984, %v1691
    %v1986 = vpop.permute.xlu0 %1985
    %1989 = vset.pattern.permute.xlu0 0
    %1990 = vperm.xlu0 %1989, %v1692
    %v1991 = vpop.permute.xlu0 %1990
    %1994 = vset.pattern.permute.xlu0 0
    %1995 = vperm.xlu0 %1994, %v1693
    %v1996 = vpop.permute.xlu0 %1995
    %1999 = vset.pattern.permute.xlu0 0
    %2000 = vperm.xlu0 %1999, %v1694
    %v2001 = vpop.permute.xlu0 %2000
    %2004 = vset.pattern.permute.xlu0 0
    %2005 = vperm.xlu0 %2004, %v1695
    %v2006 = vpop.permute.xlu0 %2005
    %2009 = vset.pattern.permute.xlu0 0
    %2010 = vperm.xlu0 %2009, %v1696
    %v2011 = vpop.permute.xlu0 %2010
    %2014 = vset.pattern.permute.xlu0 0
    %2015 = vperm.xlu0 %2014, %v1697
    %v2016 = vpop.permute.xlu0 %2015
    %v2018 = vmul.f32 %v1701, %v1163
    %v2019 = vmul.f32 %v1706, %v1165
    %v2020 = vmul.f32 %v1711, %v1168
    %v2021 = vmul.f32 %v1716, %v1170
    %v2022 = vmul.f32 %v1721, %v1173
    %v2023 = vmul.f32 %v1726, %v1175
    %v2024 = vmul.f32 %v1731, %v1178
    %v2025 = vmul.f32 %v1736, %v1180
    %v2026 = vmul.f32 %v1741, %v1183
    %v2027 = vmul.f32 %v1746, %v1185
    %v2028 = vmul.f32 %v1751, %v1188
    %v2029 = vmul.f32 %v1756, %v1190
    %v2030 = vmul.f32 %v1761, %v1193
    %v2031 = vmul.f32 %v1766, %v1195
    %v2032 = vmul.f32 %v1771, %v1198
    %v2033 = vmul.f32 %v1776, %v1200
    %v2034 = vmul.f32 %v1781, %v1203
    %v2035 = vmul.f32 %v1786, %v1205
    %v2036 = vmul.f32 %v1791, %v1208
    %v2037 = vmul.f32 %v1796, %v1210
    %v2038 = vmul.f32 %v1801, %v1213
    %v2039 = vmul.f32 %v1806, %v1215
    %v2040 = vmul.f32 %v1811, %v1218
    %v2041 = vmul.f32 %v1816, %v1220
    %v2042 = vmul.f32 %v1821, %v1223
    %v2043 = vmul.f32 %v1826, %v1225
    %v2044 = vmul.f32 %v1831, %v1228
    %v2045 = vmul.f32 %v1836, %v1230
    %v2046 = vmul.f32 %v1841, %v1233
    %v2047 = vmul.f32 %v1846, %v1235
    %v2048 = vmul.f32 %v1851, %v1238
    %v2049 = vmul.f32 %v1856, %v1240
    %v2050 = vmul.f32 %v1861, %v1243
    %v2051 = vmul.f32 %v1866, %v1245
    %v2052 = vmul.f32 %v1871, %v1248
    %v2053 = vmul.f32 %v1876, %v1250
    %v2054 = vmul.f32 %v1881, %v1253
    %v2055 = vmul.f32 %v1886, %v1255
    %v2056 = vmul.f32 %v1891, %v1258
    %v2057 = vmul.f32 %v1896, %v1260
    %v2058 = vmul.f32 %v1901, %v1263
    %v2059 = vmul.f32 %v1906, %v1265
    %v2060 = vmul.f32 %v1911, %v1268
    %v2061 = vmul.f32 %v1916, %v1270
    %v2062 = vmul.f32 %v1921, %v1273
    %v2063 = vmul.f32 %v1926, %v1275
    %v2064 = vmul.f32 %v1931, %v1278
    %v2065 = vmul.f32 %v1936, %v1280
    %v2066 = vmul.f32 %v1941, %v1283
    %v2067 = vmul.f32 %v1946, %v1285
    %v2068 = vmul.f32 %v1951, %v1288
    %v2069 = vmul.f32 %v1956, %v1290
    %v2070 = vmul.f32 %v1961, %v1293
    %v2071 = vmul.f32 %v1966, %v1295
    %v2072 = vmul.f32 %v1971, %v1298
    %v2073 = vmul.f32 %v1976, %v1300
    %v2074 = vmul.f32 %v1981, %v1303
    %v2075 = vmul.f32 %v1986, %v1305
    %v2076 = vmul.f32 %v1991, %v1308
    %v2077 = vmul.f32 %v1996, %v1310
    %v2078 = vmul.f32 %v2001, %v1313
    %v2079 = vmul.f32 %v2006, %v1315
    %v2080 = vmul.f32 %v2011, %v1318
    %v2081 = vmul.f32 %v2016, %v1320
    %v2082 = vadd.f32 %v2018, %v2026
    %v2083 = vadd.f32 %v2082, %v2034
    %v2084 = vadd.f32 %v2083, %v2042
    %v2085 = vadd.f32 %v2084, %v2050
    %v2086 = vadd.f32 %v2085, %v2058
    %v2087 = vadd.f32 %v2086, %v2066
    %v2088 = vadd.f32 %v2087, %v2074
    %v2089 = vadd.f32 %v2019, %v2027
    %v2090 = vadd.f32 %v2089, %v2035
    %v2091 = vadd.f32 %v2090, %v2043
    %v2092 = vadd.f32 %v2091, %v2051
    %v2093 = vadd.f32 %v2092, %v2059
    %v2094 = vadd.f32 %v2093, %v2067
    %v2095 = vadd.f32 %v2094, %v2075
    %v2096 = vadd.f32 %v2020, %v2028
    %v2097 = vadd.f32 %v2096, %v2036
    %v2098 = vadd.f32 %v2097, %v2044
    %v2099 = vadd.f32 %v2098, %v2052
    %v2100 = vadd.f32 %v2099, %v2060
    %v2101 = vadd.f32 %v2100, %v2068
    %v2102 = vadd.f32 %v2101, %v2076
    %v2103 = vadd.f32 %v2021, %v2029
    %v2104 = vadd.f32 %v2103, %v2037
    %v2105 = vadd.f32 %v2104, %v2045
    %v2106 = vadd.f32 %v2105, %v2053
    %v2107 = vadd.f32 %v2106, %v2061
    %v2108 = vadd.f32 %v2107, %v2069
    %v2109 = vadd.f32 %v2108, %v2077
    %v2110 = vadd.f32 %v2022, %v2030
    %v2111 = vadd.f32 %v2110, %v2038
    %v2112 = vadd.f32 %v2111, %v2046
    %v2113 = vadd.f32 %v2112, %v2054
    %v2114 = vadd.f32 %v2113, %v2062
    %v2115 = vadd.f32 %v2114, %v2070
    %v2116 = vadd.f32 %v2115, %v2078
    %v2117 = vadd.f32 %v2023, %v2031
    %v2118 = vadd.f32 %v2117, %v2039
    %v2119 = vadd.f32 %v2118, %v2047
    %v2120 = vadd.f32 %v2119, %v2055
    %v2121 = vadd.f32 %v2120, %v2063
    %v2122 = vadd.f32 %v2121, %v2071
    %v2123 = vadd.f32 %v2122, %v2079
    %v2124 = vadd.f32 %v2024, %v2032
    %v2125 = vadd.f32 %v2124, %v2040
    %v2126 = vadd.f32 %v2125, %v2048
    %v2127 = vadd.f32 %v2126, %v2056
    %v2128 = vadd.f32 %v2127, %v2064
    %v2129 = vadd.f32 %v2128, %v2072
    %v2130 = vadd.f32 %v2129, %v2080
    %v2131 = vadd.f32 %v2025, %v2033
    %v2132 = vadd.f32 %v2131, %v2041
    %v2133 = vadd.f32 %v2132, %v2049
    %v2134 = vadd.f32 %v2133, %v2057
    %v2135 = vadd.f32 %v2134, %v2065
    %v2136 = vadd.f32 %v2135, %v2073
    %v2137 = vadd.f32 %v2136, %v2081
    %v2138 = vld [vmem:[%s4] sm:$0x1]
    %v2140 = vperm.slane %v2138, 0
    %v2142 = vadd.f32 %v2088, %v2140
    %v2143 = vadd.f32 %v2095, %v2140
    %v2144 = vadd.f32 %v2102, %v2140
    %v2145 = vadd.f32 %v2109, %v2140
    %v2146 = vadd.f32 %v2116, %v2140
    %v2147 = vadd.f32 %v2123, %v2140
    %v2148 = vadd.f32 %v2130, %v2140
    %v2149 = vadd.f32 %v2137, %v2140
    %2150 = vst [vmem:[#allocation2] sm:$0xff] %v2142
    %2151 = vst [vmem:[#allocation2 + $0x8] sm:$0xff] %v2143
    %2152 = vst [vmem:[#allocation2 + $0x10] sm:$0xff] %v2144
    %2153 = vst [vmem:[#allocation2 + $0x18] sm:$0xff] %v2145
    %2154 = vst [vmem:[#allocation2 + $0x20] sm:$0xff] %v2146
    %2155 = vst [vmem:[#allocation2 + $0x28] sm:$0xff] %v2147
    %2156 = vst [vmem:[#allocation2 + $0x30] sm:$0xff] %v2148
    %2157 = vst [vmem:[#allocation2 + $0x38] sm:$0xff] %v2149
    // Predicated region
    $region22: #{tpu_custom_call.1} parent=1 // pred_check
      _
    $region23: #{tpu_custom_call.1} parent=1 // pred_check_branch
      %2159 = sbr.rel (0) target = $region25
    $region24: #{tpu_custom_call.1} parent=1 // pred_region
      %2161 = vsyncadd [#allocation3], 0
      %s2162 = sshll.u32 [#allocation2], 4
      %s2163 = int_to_ptr.vmem [resolvable:$true] %s2162
      %s2164 = sshll.u32 %s5, 4
      %s2165 = int_to_ptr.hbm [resolvable:$true] %s2164
      %2170 = dma.vmem_to_hbm [thread:$0]  %s2163, 1024, %s2165, [#allocation3], 128, 128, 8
    $region25: #{tpu_custom_call.1} parent=1 // pred_fallthru
      _
    // Predicated region
    $region26: #{tpu_custom_call.1} parent=1 // pred_check
      _
    $region27: #{tpu_custom_call.1} parent=1 // pred_check_branch
      %2172 = sbr.rel (0) target = $region29
    $region28: #{tpu_custom_call.1} parent=1 // pred_region
      %2174 = dma.done [#allocation3], 1024
    $region29: #{tpu_custom_call.1} parent=1 // pred_fallthru
      _
    %2175 = vsyncpa [#allocation3], 1

</llo_original>
